<compile_context>
chip_gen: v6e
topology: v6e:2x2x1
jax: 0.10.0
libtpu: 0.0.40
codegen_flags: <defaults>
</compile_context>

<pallas_src>
import functools
import numpy as np
import jax
import jax.numpy as jnp
from jax.experimental import pallas as pl
from jax.experimental.pallas import tpu as pltpu


def _round_up(v, m):
    return ((v + m - 1) // m) * m


# ----------------------------------------------------------------------------
# Parameter construction (plain numpy) -- mirrors init_kernels() exactly.
# ----------------------------------------------------------------------------
def _window(win_len, win_type):
    if win_type is None or win_type == "None":
        return np.ones(win_len)
    n = np.arange(win_len)
    if win_type == "hamming":           # scipy.signal.get_window('hamming', n, fftbins=True)
        return 0.54 - 0.46 * np.cos(2.0 * np.pi * n / win_len)
    if win_type in ("hann", "hanning"):
        return 0.5 - 0.5 * np.cos(2.0 * np.pi * n / win_len)
    # TODO(synk): 'SGP' (externally supplied window tensor) and other scipy windows.
    raise ValueError(f"unsupported win_type: {win_type}")


def init_stft_kernel(win_len, fft_len, win_type="hamming"):
    window = _window(win_len, win_type)
    N = fft_len
    fourier_basis = np.fft.rfft(np.eye(N))[:win_len]            # (win_len, N//2+1) complex
    kernel = np.concatenate([np.real(fourier_basis),
                             np.imag(fourier_basis)], 1).T      # (N+2, win_len)
    kernel = kernel * window
    return kernel.astype(np.float32)


# ----------------------------------------------------------------------------
# Pallas kernel: build the frame slab from the per-tile chunk window, one fused
# MXU matmul, transpose once, mags/phase (or real/imag) epilogue.
# ----------------------------------------------------------------------------
def _make_kernel(tm, hR, R, dsplit, dim8, compute_mags, out_dtype, precision):
    def kernel(main_ref, halo_ref, w_ref, out0_ref, out1_ref):
        # main_ref : (tm, Wcp)   chunk rows [i*tm, i*tm + tm)
        # halo_ref : (hR, Wcp)   chunk rows [i*tm + tm, i*tm + tm + hR)   (hR >= R-1)
        # w_ref    : (R*Wcp, 2*dsplit)
        # out*_ref : (dim8, tm)
        ext = jnp.concatenate([main_ref[...], halo_ref[...]], axis=0)   # (tm+hR, Wcp)
        # Frame slab: column block k = chunk rows [k, k+tm).  The shifted slices are
        # in-register (equivalent to pltpu.roll(ext, -k, axis=0)[:tm]); no VMEM reload.
        parts = [ext[:tm]]
        for k in range(1, R):
            parts.append(ext[k:k + tm])
        slab = parts[0] if R == 1 else jnp.concatenate(parts, axis=-1)  # (tm, R*Wcp)
        acc = jnp.dot(slab, w_ref[...],
                      preferred_element_type=jnp.float32,
                      precision=precision)                               # (tm, 2*dsplit) f32
        acc_t = acc.T                                                    # (2*dsplit, tm)
        real = acc_t[:dim8, :]                                           # aligned sublane slice
        imag = acc_t[dsplit:dsplit + dim8, :]
        if compute_mags:
            out0_ref[...] = jnp.sqrt(real * real + imag * imag).astype(out_dtype)
            out1_ref[...] = jnp.arctan2(imag, real).astype(out_dtype)
        else:
            out0_ref[...] = real.astype(out_dtype)
            out1_ref[...] = imag.astype(out_dtype)

    return kernel


# ----------------------------------------------------------------------------
# Wrapper
# ----------------------------------------------------------------------------
@functools.partial(
    jax.jit, static_argnums=(1, 2, 3),
    static_argnames=("win_type", "feature_type", "out_dtype", "compute_dtype", "tm"))
def conv_stft(x, win_len, win_inc, fft_len=None, win_type="hamming",
              feature_type="real", out_dtype=jnp.bfloat16,
              compute_dtype=jnp.float32, tm=256):
    """ConvSTFT forward.

    x: (B, T) or (B, 1, T).
    feature_type='real'    -> (mags, phase), each (B, fft_len//2+1, T_out).
    feature_type='complex' -> (B, fft_len+2, T_out), like torch's conv output.
    out_dtype: storage dtype of the outputs (bf16 default per perf review; pass
               jnp.float32 for exact PyTorch parity -- math is f32 either way).
    compute_dtype: MXU input dtype (f32 default; bf16 opt-in for 2-3x matmul speed).
    tm: time tile (multiple of 128); raise to 512 for long signals on v5e.
    """
    if x.ndim == 3:
        x = x[:, 0, :]
    assert x.ndim == 2, "expected (B, T) or (B, 1, T) input"
    if fft_len is None:
        fft_len = int(2 ** np.ceil(np.log2(win_len)))
    B, T = x.shape
    stride = win_inc
    pad = win_len - stride
    assert pad >= 0, "win_inc must be <= win_len"
    dim = fft_len // 2 + 1
    dim8 = _round_up(dim, 8)          # output freq rows: minimal (8) padding
    dsplit = _round_up(dim, 64)       # real/imag split inside the accumulator: keeps
    C2 = 2 * dsplit                   # matmul N and the per-tile transpose 128-aligned

    T_out = (T + 2 * pad - win_len) // stride + 1
    assert T_out >= 1
    tm = _round_up(max(int(tm), 128), 128)
    tm = min(tm, _round_up(T_out, 128))
    n_tiles = (T_out + tm - 1) // tm
    T_out_pad = n_tiles * tm

    x = x.astype(jnp.float32)

    fast = (win_len % stride == 0) and (win_len // stride - 1 <= 128)
    if fast:
        # Audio -> non-overlapping (B, NC, Wc) chunks; frame f = chunks[f : f + R].
        # HBM read traffic stays ~= raw audio (times 128/stride lane pad, not win_len/stride).
        R, Wc = win_len // stride, stride
        hR = 8
        while hR < R - 1:
            hR *= 2                   # power of two <= 128 -> divides tm
        Wcp = _round_up(Wc, 128)
        NC = T_out_pad + hR
        total = NC * Wc
        xp = jnp.pad(x, ((0, 0), (pad, pad)))                  # exact torch F.pad
        L = T + 2 * pad
        if L < total:
            xp = jnp.pad(xp, ((0, 0), (0, total - L)))
        else:
            # Tail samples past the last *valid* frame are never read by frames < T_out.
            # Frames in [T_out, T_out_pad) may hold arbitrary finite values; they are
            # trimmed below -- never consume the padded output region.
            xp = xp[:, :total]
        chunks = xp.reshape(B, NC, Wc)
        if Wcp > Wc:
            chunks = jnp.pad(chunks, ((0, 0), (0, 0), (0, Wcp - Wc)))
    else:
        # TODO(synk): general hop sizes build frames with an XLA gather (R = 1);
        # an in-kernel gcd-strided framing would avoid the data expansion.
        R, Wc = 1, win_len
        hR = 8
        Wcp = _round_up(win_len, 128)
        NC = T_out_pad + hR
        xp = jnp.pad(x, ((0, 0), (pad, pad)))
        idx = np.arange(T_out)[:, None] * stride + np.arange(win_len)[None, :]
        frames = xp[:, idx]                                    # (B, T_out, win_len)
        chunks = jnp.pad(frames, ((0, 0), (0, NC - T_out), (0, Wcp - win_len)))

    Kp = R * Wcp
    chunks = chunks.astype(compute_dtype)

    # Weight (Kp, C2): chunk k's window coefficients in rows [k*Wcp, k*Wcp + Wc);
    # real DFT part in cols [0, dim), imag part in cols [dsplit, dsplit + dim); rest zero.
    Wt = init_stft_kernel(win_len, fft_len, win_type).T        # (win_len, fft_len + 2)
    Wp = np.zeros((Kp, C2), np.float32)
    for k in range(R):
        rows = Wt[k * Wc:(k + 1) * Wc]
        Wp[k * Wcp:k * Wcp + rows.shape[0], :dim] = rows[:, :dim]
        Wp[k * Wcp:k * Wcp + rows.shape[0], dsplit:dsplit + dim] = rows[:, dim:]
    weight = jnp.asarray(Wp, dtype=compute_dtype)

    f32_inputs = np.dtype(compute_dtype) == np.dtype(np.float32)
    precision = jax.lax.Precision.HIGHEST if f32_inputs else None
    compute_mags = (feature_type != "complex")
    kernel = _make_kernel(tm, hR, R, dsplit, dim8, compute_mags, out_dtype, precision)

    in_bytes = np.dtype(compute_dtype).itemsize
    out_bytes = np.dtype(out_dtype).itemsize
    vmem_est = (2 * (tm * Wcp + hR * Wcp + Kp * C2) * in_bytes     # double-buffered blocks
                + 2 * 2 * dim8 * tm * out_bytes                    # output blocks
                + 3 * (tm * Kp + tm * C2) * 4                      # slab / acc transients
                + (4 << 20))
    vmem_limit = int(min(max(vmem_est, 16 << 20), 32 << 20))

    out0, out1 = pl.pallas_call(
        kernel,
        out_shape=(
            jax.ShapeDtypeStruct((B, dim8, T_out_pad), out_dtype),
            jax.ShapeDtypeStruct((B, dim8, T_out_pad), out_dtype),
        ),
        grid_spec=pltpu.PrefetchScalarGridSpec(
            num_scalar_prefetch=0,
            grid=(B, n_tiles),
            in_specs=[
                # Per-tile chunk rows [i*tm, (i+1)*tm) ...
                pl.BlockSpec((None, tm, Wcp), lambda b, i: (b, i, 0)),
                # ... plus an hR-row halo at (i+1)*tm covering the R-1 overlap rows.
                pl.BlockSpec((None, hR, Wcp), lambda b, i: (b, (i + 1) * (tm // hR), 0)),
                # Full DFT weight; constant block index -> DMA'd only once.
                pl.BlockSpec((Kp, C2), lambda b, i: (0, 0)),
            ],
            out_specs=[
                pl.BlockSpec((None, dim8, tm), lambda b, i: (b, 0, i)),
                pl.BlockSpec((None, dim8, tm), lambda b, i: (b, 0, i)),
            ],
        ),
        compiler_params=pltpu.CompilerParams(
            dimension_semantics=("parallel", "parallel"),
            vmem_limit_bytes=vmem_limit,
        ),
    )(chunks, chunks, weight)

    # Trim freq/time padding -> PyTorch shapes.  Under a larger jit this fuses.
    out0 = out0[:, :dim, :T_out]
    out1 = out1[:, :dim, :T_out]
    if feature_type == "complex":
        return jnp.concatenate([out0, out1], axis=1)           # (B, fft_len + 2, T_out)
    return out0, out1


# ----------------------------------------------------------------------------
# Reference (pure numpy, float64) for sanity checks.
# ----------------------------------------------------------------------------
def _ref_conv_stft(x_np, win_len, win_inc, fft_len, win_type="hamming"):
    W = init_stft_kernel(win_len, fft_len, win_type)           # (fft_len+2, win_len)
    stride = win_inc
    pad = win_len - stride
    B, T = x_np.shape
    xp = np.pad(x_np, ((0, 0), (pad, pad)))
    T_out = (T + 2 * pad - win_len) // stride + 1
    out = np.zeros((B, W.shape[0], T_out), np.float64)
    for t in range(T_out):
        seg = xp[:, t * stride: t * stride + win_len]
        out[:, :, t] = seg @ W.T
    dim = fft_len // 2 + 1
    real, imag = out[:, :dim, :], out[:, dim:, :]
    return np.sqrt(real ** 2 + imag ** 2), np.arctan2(imag, real), out


def _assert_phase_close(phase, ref_phase, mask, atol):
    # Compare as angular difference so the +/- pi wrap (exact-zero imag bins) is benign.
    d = np.angle(np.exp(1j * (phase.astype(np.float64) - ref_phase)))
    np.testing.assert_allclose(np.abs(d[mask]), 0.0, atol=atol)


if __name__ == "__main__":
    key = jax.random.PRNGKey(0)
    k1, k2 = jax.random.split(key)

    # Config 1: fast chunked path (win_len % win_inc == 0).
    win_len, win_inc, fft_len = 16, 8, 16
    B, T = 2, 256
    x = jax.random.normal(k1, (B, T), dtype=jnp.float32)
    ref_m, ref_p, ref_c = _ref_conv_stft(np.asarray(x), win_len, win_inc, fft_len)
    mask = ref_m > 1e-2                       # phase is ill-conditioned near zero magnitude

    # 1a) exact-parity f32 outputs.
    mags, phase = conv_stft(x, win_len, win_inc, fft_len, out_dtype=jnp.float32)
    mags = np.asarray(jax.block_until_ready(mags))
    phase = np.asarray(jax.block_until_ready(phase))
    assert mags.shape == ref_m.shape and phase.shape == ref_p.shape
    np.testing.assert_allclose(mags, ref_m, rtol=1e-3, atol=1e-3)
    _assert_phase_close(phase, ref_p, mask, atol=1e-2)

    # 1b) default bf16 storage (perf path): looser tolerances.
    mags_b, phase_b = conv_stft(x, win_len, win_inc, fft_len)
    mags_b = np.asarray(jax.block_until_ready(mags_b)).astype(np.float32)
    phase_b = np.asarray(jax.block_until_ready(phase_b)).astype(np.float32)
    np.testing.assert_allclose(mags_b, ref_m, rtol=3e-2, atol=1e-2)
    _assert_phase_close(phase_b, ref_p, mask, atol=5e-2)

    # 1c) 'complex' feature_type (no sqrt/arctan2 epilogue).
    cplx = conv_stft(x, win_len, win_inc, fft_len, feature_type="complex",
                     out_dtype=jnp.float32)
    cplx = np.asarray(jax.block_until_ready(cplx))
    assert cplx.shape == ref_c.shape
    np.testing.assert_allclose(cplx, ref_c, rtol=1e-3, atol=1e-3)

    # Config 2: general hop size (win_len % win_inc != 0) -> gather fallback, same kernel.
    win_len2, win_inc2, fft_len2 = 20, 6, 32
    x2 = jax.random.normal(k2, (2, 200), dtype=jnp.float32)
    ref_m2, ref_p2, _ = _ref_conv_stft(np.asarray(x2), win_len2, win_inc2, fft_len2)
    m2, p2 = conv_stft(x2, win_len2, win_inc2, fft_len2, out_dtype=jnp.float32)
    m2 = np.asarray(jax.block_until_ready(m2))
    p2 = np.asarray(jax.block_until_ready(p2))
    np.testing.assert_allclose(m2, ref_m2, rtol=1e-3, atol=1e-3)
    _assert_phase_close(p2, ref_p2, ref_m2 > 1e-2, atol=1e-2)

    print("KERNEL_OK")
</pallas_src>

<mosaic_0001>
module attributes {stable_mosaic.version = 11 : i64} {
  func.func @kernel(%arg0: i32, %arg1: i32, %arg2: memref<1x128x128xf32, #tpu.memory_space<vmem>>, %arg3: memref<1x8x128xf32, #tpu.memory_space<vmem>>, %arg4: memref<256x128xf32, #tpu.memory_space<vmem>>, %arg5: memref<1x16x128xf32, #tpu.memory_space<vmem>>, %arg6: memref<1x16x128xf32, #tpu.memory_space<vmem>>) attributes {dimension_semantics = [#tpu.dimension_semantics<parallel>, #tpu.dimension_semantics<parallel>], iteration_bounds = array<i64: 2, 1>, scalar_prefetch = 0 : i64, scratch_operands = 0 : i64, tpu.core_type = #tpu.core_type<tc>, window_params = [{transform_indices = @transform_0, window_bounds = array<i64: 1, 128, 128>}, {transform_indices = @transform_1, window_bounds = array<i64: 1, 8, 128>}, {pipeline_mode = #tpu.pipeline_mode<synchronous>, transform_indices = @transform_2, window_bounds = array<i64: 256, 128>}, {transform_indices = @transform_3, window_bounds = array<i64: 1, 16, 128>}, {transform_indices = @transform_4, window_bounds = array<i64: 1, 16, 128>}]} {
    %c0 = arith.constant 0 : index
    %c0_0 = arith.constant 0 : index
    %c0_1 = arith.constant 0 : index
    %0 = vector.load %arg2[%c0, %c0_0, %c0_1] : memref<1x128x128xf32, #tpu.memory_space<vmem>>, vector<1x128x128xf32>
    %1 = vector.shape_cast %0 : vector<1x128x128xf32> to vector<128x128xf32>
    %c0_2 = arith.constant 0 : index
    %c0_3 = arith.constant 0 : index
    %c0_4 = arith.constant 0 : index
    %2 = vector.load %arg3[%c0_2, %c0_3, %c0_4] : memref<1x8x128xf32, #tpu.memory_space<vmem>>, vector<1x8x128xf32>
    %3 = vector.shape_cast %2 : vector<1x8x128xf32> to vector<8x128xf32>
    %4 = tpu.concatenate %1, %3 in 0 : vector<128x128xf32>, vector<8x128xf32> -> vector<136x128xf32>
    %5 = vector.extract_strided_slice %4 {offsets = [0, 0], sizes = [128, 128], strides = [1, 1]} : vector<136x128xf32> to vector<128x128xf32>
    %6 = vector.extract_strided_slice %4 {offsets = [1, 0], sizes = [128, 128], strides = [1, 1]} : vector<136x128xf32> to vector<128x128xf32>
    %7 = tpu.concatenate %5, %6 in 1 : vector<128x128xf32>, vector<128x128xf32> -> vector<128x256xf32>
    %c0_5 = arith.constant 0 : index
    %c0_6 = arith.constant 0 : index
    %8 = vector.load %arg4[%c0_5, %c0_6] : memref<256x128xf32, #tpu.memory_space<vmem>>, vector<256x128xf32>
    %cst = arith.constant dense<0.000000e+00> : vector<128x128xf32>
    %9 = tpu.matmul %7, %8, %cst {dimension_numbers = #tpu.dot_dimension_numbers<[1], [0], [0], [1], [0, 0, 1, 1], [], []>, precision = #tpu.contract_precision<fp32>} : vector<128x256xf32>, vector<256x128xf32>, vector<128x128xf32> -> vector<128x128xf32>
    %10 = tpu.transpose %9, [1, 0] : vector<128x128xf32> -> vector<128x128xf32>
    %11 = vector.extract_strided_slice %10 {offsets = [0, 0], sizes = [16, 128], strides = [1, 1]} : vector<128x128xf32> to vector<16x128xf32>
    %12 = vector.extract_strided_slice %10 {offsets = [64, 0], sizes = [16, 128], strides = [1, 1]} : vector<128x128xf32> to vector<16x128xf32>
    %13 = arith.mulf %11, %11 : vector<16x128xf32>
    %14 = arith.mulf %12, %12 : vector<16x128xf32>
    %15 = arith.addf %13, %14 : vector<16x128xf32>
    %16 = math.sqrt %15 : vector<16x128xf32>
    %c0_7 = arith.constant 0 : index
    %c0_8 = arith.constant 0 : index
    %c0_9 = arith.constant 0 : index
    %17 = vector.load %arg5[%c0_7, %c0_8, %c0_9] : memref<1x16x128xf32, #tpu.memory_space<vmem>>, vector<1x16x128xf32>
    %18 = vector.shape_cast %17 : vector<1x16x128xf32> to vector<16x128xf32>
    %19 = vector.shape_cast %16 : vector<16x128xf32> to vector<1x16x128xf32>
    tpu.vector_store %arg5[%c0_7, %c0_8, %c0_9], %19 {strides = array<i32>} : memref<1x16x128xf32, #tpu.memory_space<vmem>>, vector<1x16x128xf32>,
    %20 = math.atan2 %12, %11 : vector<16x128xf32>
    %c0_10 = arith.constant 0 : index
    %c0_11 = arith.constant 0 : index
    %c0_12 = arith.constant 0 : index
    %21 = vector.load %arg6[%c0_10, %c0_11, %c0_12] : memref<1x16x128xf32, #tpu.memory_space<vmem>>, vector<1x16x128xf32>
    %22 = vector.shape_cast %21 : vector<1x16x128xf32> to vector<16x128xf32>
    %23 = vector.shape_cast %20 : vector<16x128xf32> to vector<1x16x128xf32>
    tpu.vector_store %arg6[%c0_10, %c0_11, %c0_12], %23 {strides = array<i32>} : memref<1x16x128xf32, #tpu.memory_space<vmem>>, vector<1x16x128xf32>,
    return
  }
  func.func @transform_0(%arg0: i32, %arg1: i32) -> (i32, i32, i32) {
    %c0_i32 = arith.constant 0 : i32
    %c0_i32_0 = arith.constant 0 : i32
    return %arg0, %arg1, %c0_i32 : i32, i32, i32
  }
  func.func @transform_1(%arg0: i32, %arg1: i32) -> (i32, i32, i32) {
    %c1_i32 = arith.constant 1 : i32
    %0 = arith.addi %arg1, %c1_i32 : i32
    %c16_i32 = arith.constant 16 : i32
    %1 = arith.muli %0, %c16_i32 : i32
    %c0_i32 = arith.constant 0 : i32
    %c0_i32_0 = arith.constant 0 : i32
    return %arg0, %1, %c0_i32 : i32, i32, i32
  }
  func.func @transform_2(%arg0: i32, %arg1: i32) -> (i32, i32) {
    %c0_i32 = arith.constant 0 : i32
    %c0_i32_0 = arith.constant 0 : i32
    %c0_i32_1 = arith.constant 0 : i32
    return %c0_i32, %c0_i32_0 : i32, i32
  }
  func.func @transform_3(%arg0: i32, %arg1: i32) -> (i32, i32, i32) {
    %c0_i32 = arith.constant 0 : i32
    %c0_i32_0 = arith.constant 0 : i32
    return %arg0, %c0_i32, %arg1 : i32, i32, i32
  }
  func.func @transform_4(%arg0: i32, %arg1: i32) -> (i32, i32, i32) {
    %c0_i32 = arith.constant 0 : i32
    %c0_i32_0 = arith.constant 0 : i32
    return %arg0, %c0_i32, %arg1 : i32, i32, i32
  }
}

</mosaic_0001>

<llo_original>
// kernel: conv_stft.1
$region0: #{conv_stft.1}
  #allocation0 [shape = 'u32[]', space=smem, size = 0x4, offset = 0x4, fixed_abs, tag = 'smem constant byte address 0x4 - core index']
  #allocation1 [shape = 'u32[144,128]{1,0:T(1,128)}', space=vmem, size = 0x12000, scoped, tag = 'internal scratch']
  %s0 = inlined_call_operand.vmem [shape: f32[2,136,128], index: 0, kind: input, shape index: {}, may-alias: {0,1}]
  %s1 = inlined_call_operand.vmem [shape: f32[2,136,128], index: 1, kind: input, shape index: {}, may-alias: {0,1}]
  %s2 = inlined_call_operand.vmem [shape: f32[256,128], index: 2, kind: input, shape index: {}]
  %s3 = inlined_call_operand.vmem [shape: f32[2,16,128], index: 3, kind: output, shape index: {0}]
  %s4 = inlined_call_operand.vmem [shape: f32[2,16,128], index: 4, kind: output, shape index: {1}]
  %5 = xla_tuple %s3, %s4
  %s6 = sld [smem:[#allocation0]]
  $region53: #{conv_stft.1} parent=0
    _
  %s8 = ssub.s32 1, %s6
  %s9 = scalar_select 0, %s8, %s6
  loop: start=0, step=1, limit=4
  $region2: #{conv_stft.1} parent=0 // loop_pre_header
    _
  $region3: #{conv_stft.1} parent=0 // loop_header
    %s11 = sphi 0, %s15
    %p12 = scmp.ge.s32.totalorder %s11, 4
    %s18 = sphi 0, %s30
    %s19 = sphi 0, %s26
    %s20 = sphi 0, %s18
    %s21 = sphi 0, %s19
    %s22 = sphi 0, %s20
    %s23 = sphi 0, %s21
    %s35 = sphi 0, %s37
    %s38 = sphi 0, %s35
    %s39 = sphi 0, %s38
    %s55 = sphi 0, %s39
    %s67 = sphi 0, %s69
    %s70 = sphi 0, %s67
    %s71 = sphi 0, %s70
    %s87 = sphi 0, %s71
    %s91 = sphi 0, %s91
    %s93 = sphi 0, %s91
    %s94 = sphi 0, %s93
    %s108 = sphi 0, %s94
    %s116 = sphi 0, %s118
    %s119 = sphi 0, %s116
    %s120 = sphi 0, %s119
    %s136 = sphi 0, %s120
    %s144 = sphi 0, %s146
    %s147 = sphi 0, %s144
    %s148 = sphi 0, %s147
    %s164 = sphi 0, %s148
  $region4: #{conv_stft.1} parent=0 // loop_header_branch
    %14 = sbr.rel (%p12) target = $region8
  $region5: #{conv_stft.1} parent=0 // loop_body
    %s16 = ssub.s32 %s11, 1
    %s17 = ssub.s32 %s11, 2
    %s24 = sadd.s32 1, %s19
    %p25 = scmp.ge.s32.totalorder %s24, 1
    %s26 = scalar_select %p25, 0, %s24
    %s27 = sadd.s32 1, %s18
    %s28 = scalar_select %p25, %s27, %s18
    %p29 = scmp.ge.s32.totalorder %s28, 2
    %s30 = scalar_select %p29, 0, %s28
    %s31 = ssub.s32 %s18, %s30
    %s32 = ssub.s32 %s19, %s26
    %s33 = sor.u32 %s31, %s32
    %p34 = scmp.eq.s32.totalorder %s33, 0
    %s36 = sadd.s32 %s35, 1
    %s37 = scalar_select %p34, %s35, %s36
    %p40 = pneg %p34
    %p41 = scmp.eq.s32.totalorder %s11, 1
    %p42 = por %p40, %p41
    %p43 = scmp.ne.s32.totalorder %s35, %s38
    %p44 = scmp.eq.s32.totalorder %s11, 0
    %p45 = por %p43, %p44
    %p46 = scmp.ne.s32.totalorder %s35, %s38
    %p47 = scmp.eq.s32.totalorder %s16, 1
    %p48 = por %p46, %p47
    %p49 = scmp.ne.s32.totalorder %s38, %s39
    %p50 = scmp.eq.s32.totalorder %s16, 0
    %p51 = por %p49, %p50
    %p52 = scmp.ne.s32.totalorder %s38, %s39
    %p53 = scmp.eq.s32.totalorder %s17, 1
    %p54 = por %p52, %p53
    %p56 = scmp.ne.s32.totalorder %s39, %s55
    %p57 = scmp.eq.s32.totalorder %s17, 0
    %p58 = por %p56, %p57
    %s59 = sadd.s32 %s19, 1
    %s60 = smul.u32 %s59, 16
    %s61 = sadd.s32 %s26, 1
    %s62 = smul.u32 %s61, 16
    %s63 = ssub.s32 %s18, %s30
    %s64 = ssub.s32 %s60, %s62
    %s65 = sor.u32 %s63, %s64
    %p66 = scmp.eq.s32.totalorder %s65, 0
    %s68 = sadd.s32 %s67, 1
    %s69 = scalar_select %p66, %s67, %s68
    %p72 = pneg %p66
    %p73 = scmp.eq.s32.totalorder %s11, 1
    %p74 = por %p72, %p73
    %p75 = scmp.ne.s32.totalorder %s67, %s70
    %p76 = scmp.eq.s32.totalorder %s11, 0
    %p77 = por %p75, %p76
    %p78 = scmp.ne.s32.totalorder %s67, %s70
    %p79 = scmp.eq.s32.totalorder %s16, 1
    %p80 = por %p78, %p79
    %p81 = scmp.ne.s32.totalorder %s70, %s71
    %p82 = scmp.eq.s32.totalorder %s16, 0
    %p83 = por %p81, %p82
    %p84 = scmp.ne.s32.totalorder %s70, %s71
    %p85 = scmp.eq.s32.totalorder %s17, 1
    %p86 = por %p84, %p85
    %p88 = scmp.ne.s32.totalorder %s71, %s87
    %p89 = scmp.eq.s32.totalorder %s17, 0
    %p90 = por %p88, %p89
    %s92 = sadd.s32 %s91, 1
    %p95 = scmp.eq.s32.totalorder %s11, 1
    %p96 = scmp.ne.s32.totalorder %s91, %s93
    %p97 = scmp.eq.s32.totalorder %s11, 0
    %p98 = por %p96, %p97
    %p99 = scmp.ne.s32.totalorder %s91, %s93
    %p100 = scmp.eq.s32.totalorder %s16, 1
    %p101 = por %p99, %p100
    %p102 = scmp.ne.s32.totalorder %s93, %s94
    %p103 = scmp.eq.s32.totalorder %s16, 0
    %p104 = por %p102, %p103
    %p105 = scmp.ne.s32.totalorder %s93, %s94
    %p106 = scmp.eq.s32.totalorder %s17, 1
    %p107 = por %p105, %p106
    %p109 = scmp.ne.s32.totalorder %s94, %s108
    %p110 = scmp.eq.s32.totalorder %s17, 0
    %p111 = por %p109, %p110
    %s112 = ssub.s32 %s18, %s30
    %s113 = ssub.s32 %s19, %s26
    %s114 = sor.u32 %s112, %s113
    %p115 = scmp.eq.s32.totalorder %s114, 0
    %s117 = sadd.s32 %s116, 1
    %s118 = scalar_select %p115, %s116, %s117
    %p121 = pneg %p115
    %p122 = scmp.eq.s32.totalorder %s11, 1
    %p123 = por %p121, %p122
    %p124 = scmp.ne.s32.totalorder %s116, %s119
    %p125 = scmp.eq.s32.totalorder %s11, 0
    %p126 = por %p124, %p125
    %p127 = scmp.ne.s32.totalorder %s116, %s119
    %p128 = scmp.eq.s32.totalorder %s16, 1
    %p129 = por %p127, %p128
    %p130 = scmp.ne.s32.totalorder %s119, %s120
    %p131 = scmp.eq.s32.totalorder %s16, 0
    %p132 = por %p130, %p131
    %p133 = scmp.ne.s32.totalorder %s119, %s120
    %p134 = scmp.eq.s32.totalorder %s17, 1
    %p135 = por %p133, %p134
    %p137 = scmp.ne.s32.totalorder %s120, %s136
    %p138 = scmp.eq.s32.totalorder %s17, 0
    %p139 = por %p137, %p138
    %s140 = ssub.s32 %s18, %s30
    %s141 = ssub.s32 %s19, %s26
    %s142 = sor.u32 %s140, %s141
    %p143 = scmp.eq.s32.totalorder %s142, 0
    %s145 = sadd.s32 %s144, 1
    %s146 = scalar_select %p143, %s144, %s145
    %p149 = pneg %p143
    %p150 = scmp.eq.s32.totalorder %s11, 1
    %p151 = por %p149, %p150
    %p152 = scmp.ne.s32.totalorder %s144, %s147
    %p153 = scmp.eq.s32.totalorder %s11, 0
    %p154 = por %p152, %p153
    %p155 = scmp.ne.s32.totalorder %s144, %s147
    %p156 = scmp.eq.s32.totalorder %s16, 1
    %p157 = por %p155, %p156
    %p158 = scmp.ne.s32.totalorder %s147, %s148
    %p159 = scmp.eq.s32.totalorder %s16, 0
    %p160 = por %p158, %p159
    %p161 = scmp.ne.s32.totalorder %s147, %s148
    %p162 = scmp.eq.s32.totalorder %s17, 1
    %p163 = por %p161, %p162
    %p165 = scmp.ne.s32.totalorder %s148, %s164
    %p166 = scmp.eq.s32.totalorder %s17, 0
    %p167 = por %p165, %p166
    %p168 = scmp.le.s32.totalorder 1, %s11
    %p169 = scmp.lt.s32.totalorder %s11, 3
    %p170 = pnand %p168, %p169
    %p171 = pneg %p170
    // Predicated region
    $region9: #{conv_stft.1} parent=5 // pred_check
      _
    $region10: #{conv_stft.1} parent=5 // pred_check_branch
      %173 = sbr.rel (%p170) target = $region12
    $region11: #{conv_stft.1} parent=5 // pred_region
      %s174 = ssub.s32 %s11, 1
      // Predicated region
      $region13: #{conv_stft.1} parent=11 // pred_check
        %p175 = pneg %p104
      $region14: #{conv_stft.1} parent=11 // pred_check_branch
        %177 = sbr.rel (%p175) target = $region16
      $region15: #{conv_stft.1} parent=11 // pred_region
        _
      $region16: #{conv_stft.1} parent=11 // pred_fallthru
        _
    $region12: #{conv_stft.1} parent=5 // pred_fallthru
      _
    %p178 = scmp.lt.s32.totalorder %s11, 2
    // Predicated region
    $region17: #{conv_stft.1} parent=5 // pred_check
      %p179 = pneg %p178
    $region18: #{conv_stft.1} parent=5 // pred_check_branch
      %181 = sbr.rel (%p179) target = $region20
    $region19: #{conv_stft.1} parent=5 // pred_region
      // Predicated region
      $region21: #{conv_stft.1} parent=19 // pred_check
        %p182 = pneg %p45
      $region22: #{conv_stft.1} parent=19 // pred_check_branch
        %184 = sbr.rel (%p182) target = $region24
      $region23: #{conv_stft.1} parent=19 // pred_region
        %s185 = smul.u32 16, %s19
        %s186 = ssub.s32 17, %s185
        %p187 = scmp.lt.s32.totalorder %s186, 16
        %s188 = scalar_select %p187, %s186, 16
        %s189 = smul.u32 128, %s188
        %p190 = scmp.lt.s32.totalorder %s18, 1
        %s191 = scalar_select %p190, %s18, 1
        %p192 = scmp.lt.s32.totalorder %s185, 16
        %s193 = scalar_select %p192, %s185, 16
        %s194 = smul.addr %s191, 17
        %s195 = sadd.s32 %s193, %s194
        %s196 = smul.addr %s195, 8
        %s197 = scalar_lea.vmem %s0, %s196
        %s198 = smul.u32 16, %s19
        %s199 = ssub.s32 17, %s198
        %p200 = scmp.lt.s32.totalorder %s199, 16
        %s201 = scalar_select %p200, %s199, 16
        %s202 = smul.u32 128, %s201
      $region24: #{conv_stft.1} parent=19 // pred_fallthru
        _
      // Predicated region
      $region25: #{conv_stft.1} parent=19 // pred_check
        %p203 = pneg %p77
      $region26: #{conv_stft.1} parent=19 // pred_check_branch
        %205 = sbr.rel (%p203) target = $region28
      $region27: #{conv_stft.1} parent=19 // pred_region
        %s206 = sadd.s32 %s19, 1
        %s207 = smul.u32 %s206, 16
        %p208 = scmp.lt.s32.totalorder %s18, 1
        %s209 = scalar_select %p208, %s18, 1
        %p210 = scmp.lt.s32.totalorder %s207, 16
        %s211 = scalar_select %p210, %s207, 16
        %s212 = smul.addr %s209, 17
        %s213 = sadd.s32 %s211, %s212
        %s214 = smul.addr %s213, 8
        %s215 = scalar_lea.vmem %s1, %s214
        %s216 = sadd.s32 %s19, 1
        %s217 = smul.u32 %s216, 16
      $region28: #{conv_stft.1} parent=19 // pred_fallthru
        _
    $region20: #{conv_stft.1} parent=5 // pred_fallthru
      _
    %p218 = scmp.le.s32.totalorder 1, %s11
    %p219 = scmp.lt.s32.totalorder %s11, 3
    %p220 = pnand %p218, %p219
    %p221 = pneg %p220
    // Predicated region
    $region29: #{conv_stft.1} parent=5 // pred_check
      _
    $region30: #{conv_stft.1} parent=5 // pred_check_branch
      %223 = sbr.rel (%p220) target = $region32
    $region31: #{conv_stft.1} parent=5 // pred_region
      %s224 = ssub.s32 %s11, 1
      %s225 = smul.u32 16, %s21
      %s226 = ssub.s32 17, %s225
      %p227 = scmp.lt.s32.totalorder %s226, 16
      %s228 = scalar_select %p227, %s226, 16
      %s229 = smul.u32 128, %s228
      %p230 = scmp.lt.s32.totalorder %s20, 1
      %s231 = scalar_select %p230, %s20, 1
      %p232 = scmp.lt.s32.totalorder %s225, 16
      %s233 = scalar_select %p232, %s225, 16
      %s234 = smul.addr %s231, 17
      %s235 = sadd.s32 %s233, %s234
      %s236 = smul.addr %s235, 8
      %s237 = scalar_lea.vmem %s0, %s236
      %p238 = pneg %p51
      %p239 = pneg %p48
      %s240 = sadd.s32 %s21, 1
      %s241 = smul.u32 %s240, 16
      %p242 = scmp.lt.s32.totalorder %s20, 1
      %s243 = scalar_select %p242, %s20, 1
      %p244 = scmp.lt.s32.totalorder %s241, 16
      %s245 = scalar_select %p244, %s241, 16
      %s246 = smul.addr %s243, 17
      %s247 = sadd.s32 %s245, %s246
      %s248 = smul.addr %s247, 8
      %s249 = scalar_lea.vmem %s1, %s248
      %p250 = pneg %p83
      %p251 = pneg %p80
      %p252 = pneg %p104
      %p253 = pneg %p101
      %p254 = pneg %p132
      %p255 = pneg %p129
      %p256 = scmp.lt.s32.totalorder %s20, 1
      %s257 = scalar_select %p256, %s20, 1
      %p258 = scmp.lt.s32.totalorder %s21, 0
      %s259 = scalar_select %p258, %s21, 0
      %s260 = smul.addr %s257, 2
      %s261 = sadd.s32 %s259, %s260
      %s262 = smul.addr %s261, 8
      %s263 = scalar_lea.vmem %s3, %s262
      %p264 = pneg %p160
      %p265 = pneg %p157
      %p266 = scmp.lt.s32.totalorder %s20, 1
      %s267 = scalar_select %p266, %s20, 1
      %p268 = scmp.lt.s32.totalorder %s21, 0
      %s269 = scalar_select %p268, %s21, 0
      %s270 = smul.addr %s267, 2
      %s271 = sadd.s32 %s269, %s270
      %s272 = smul.addr %s271, 8
      %s273 = scalar_lea.vmem %s4, %s272
      %s274 = smul.u32 16, %s21
      %s275 = ssub.s32 17, %s274
      %p276 = scmp.lt.s32.totalorder %s275, 16
      %s277 = scalar_select %p276, %s275, 16
      %s278 = smul.u32 128, %s277
      %p279 = scmp.lt.s32.totalorder %s20, 1
      %s280 = scalar_select %p279, %s20, 1
      %p281 = scmp.lt.s32.totalorder %s274, 16
      %s282 = scalar_select %p281, %s274, 16
      %s283 = smul.addr %s280, 17
      %s284 = sadd.s32 %s282, %s283
      %s285 = smul.addr %s284, 8
      %s286 = scalar_lea.vmem %s0, %s285
      %s287 = smul.u32 16, %s21
      %s288 = ssub.s32 17, %s287
      %p289 = scmp.lt.s32.totalorder %s288, 16
      %s290 = scalar_select %p289, %s288, 16
      %s291 = smul.u32 128, %s290
      %s292 = sadd.s32 %s21, 1
      %s293 = smul.u32 %s292, 16
      %p294 = scmp.lt.s32.totalorder %s20, 1
      %s295 = scalar_select %p294, %s20, 1
      %p296 = scmp.lt.s32.totalorder %s293, 16
      %s297 = scalar_select %p296, %s293, 16
      %s298 = smul.addr %s295, 17
      %s299 = sadd.s32 %s297, %s298
      %s300 = smul.addr %s299, 8
      %s301 = scalar_lea.vmem %s1, %s300
      %s302 = sadd.s32 %s21, 1
      %s303 = smul.u32 %s302, 16
      %p304 = scmp.lt.s32.totalorder %s20, 1
      %s305 = scalar_select %p304, %s20, 1
      %p306 = scmp.lt.s32.totalorder %s21, 0
      %s307 = scalar_select %p306, %s21, 0
      %s308 = smul.addr %s305, 2
      %s309 = sadd.s32 %s307, %s308
      %s310 = smul.addr %s309, 8
      %s311 = scalar_lea.vmem %s3, %s310
      %p312 = scmp.lt.s32.totalorder %s20, 1
      %s313 = scalar_select %p312, %s20, 1
      %p314 = scmp.lt.s32.totalorder %s21, 0
      %s315 = scalar_select %p314, %s21, 0
      %s316 = smul.addr %s313, 2
      %s317 = sadd.s32 %s315, %s316
      %s318 = smul.addr %s317, 8
      %s319 = scalar_lea.vmem %s4, %s318
      %v320 = vld [vmem:[%s286] sm:$0xff]
      %v321 = vld [vmem:[%s286 + $0x8] sm:$0xff]
      %v322 = vld [vmem:[%s286 + $0x10] sm:$0xff]
      %v323 = vld [vmem:[%s286 + $0x18] sm:$0xff]
      %v324 = vld [vmem:[%s286 + $0x20] sm:$0xff]
      %v325 = vld [vmem:[%s286 + $0x28] sm:$0xff]
      %v326 = vld [vmem:[%s286 + $0x30] sm:$0xff]
      %v327 = vld [vmem:[%s286 + $0x38] sm:$0xff]
      %v328 = vld [vmem:[%s286 + $0x40] sm:$0xff]
      %v329 = vld [vmem:[%s286 + $0x48] sm:$0xff]
      %v330 = vld [vmem:[%s286 + $0x50] sm:$0xff]
      %v331 = vld [vmem:[%s286 + $0x58] sm:$0xff]
      %v332 = vld [vmem:[%s286 + $0x60] sm:$0xff]
      %v333 = vld [vmem:[%s286 + $0x68] sm:$0xff]
      %v334 = vld [vmem:[%s286 + $0x70] sm:$0xff]
      %v335 = vld [vmem:[%s286 + $0x78] sm:$0xff]
      %v336 = vld [vmem:[%s301] sm:$0xff]
      %vm354 = vcmask 1046528
      %v355 = vrot.slane %v320, 1
      %v356 = vrot.slane %v321, 1
      %v357 = vsel %vm354, %v355, %v356
      %v358 = vrot.slane %v322, 1
      %v359 = vsel %vm354, %v356, %v358
      %v360 = vrot.slane %v323, 1
      %v361 = vsel %vm354, %v358, %v360
      %v362 = vrot.slane %v324, 1
      %v363 = vsel %vm354, %v360, %v362
      %v364 = vrot.slane %v325, 1
      %v365 = vsel %vm354, %v362, %v364
      %v366 = vrot.slane %v326, 1
      %v367 = vsel %vm354, %v364, %v366
      %v368 = vrot.slane %v327, 1
      %v369 = vsel %vm354, %v366, %v368
      %v370 = vrot.slane %v328, 1
      %v371 = vsel %vm354, %v368, %v370
      %v372 = vrot.slane %v329, 1
      %v373 = vsel %vm354, %v370, %v372
      %v374 = vrot.slane %v330, 1
      %v375 = vsel %vm354, %v372, %v374
      %v376 = vrot.slane %v331, 1
      %v377 = vsel %vm354, %v374, %v376
      %v378 = vrot.slane %v332, 1
      %v379 = vsel %vm354, %v376, %v378
      %v380 = vrot.slane %v333, 1
      %v381 = vsel %vm354, %v378, %v380
      %v382 = vrot.slane %v334, 1
      %v383 = vsel %vm354, %v380, %v382
      %v384 = vrot.slane %v335, 1
      %v385 = vsel %vm354, %v382, %v384
      %v386 = vrot.slane %v336, 1
      %v387 = vsel %vm354, %v384, %v386
      %v404 = vld [vmem:[%s2] sm:$0xff]
      %v405 = vld [vmem:[%s2 + $0x8] sm:$0xff]
      %v406 = vld [vmem:[%s2 + $0x10] sm:$0xff]
      %v407 = vld [vmem:[%s2 + $0x18] sm:$0xff]
      %v408 = vld [vmem:[%s2 + $0x20] sm:$0xff]
      %v409 = vld [vmem:[%s2 + $0x28] sm:$0xff]
      %v410 = vld [vmem:[%s2 + $0x30] sm:$0xff]
      %v411 = vld [vmem:[%s2 + $0x38] sm:$0xff]
      %v412 = vld [vmem:[%s2 + $0x40] sm:$0xff]
      %v413 = vld [vmem:[%s2 + $0x48] sm:$0xff]
      %v414 = vld [vmem:[%s2 + $0x50] sm:$0xff]
      %v415 = vld [vmem:[%s2 + $0x58] sm:$0xff]
      %v416 = vld [vmem:[%s2 + $0x60] sm:$0xff]
      %v417 = vld [vmem:[%s2 + $0x68] sm:$0xff]
      %v418 = vld [vmem:[%s2 + $0x70] sm:$0xff]
      %v419 = vld [vmem:[%s2 + $0x78] sm:$0xff]
      %v420 = vld [vmem:[%s2 + $0x80] sm:$0xff]
      %v421 = vld [vmem:[%s2 + $0x88] sm:$0xff]
      %v422 = vld [vmem:[%s2 + $0x90] sm:$0xff]
      %v423 = vld [vmem:[%s2 + $0x98] sm:$0xff]
      %v424 = vld [vmem:[%s2 + $0xa0] sm:$0xff]
      %v425 = vld [vmem:[%s2 + $0xa8] sm:$0xff]
      %v426 = vld [vmem:[%s2 + $0xb0] sm:$0xff]
      %v427 = vld [vmem:[%s2 + $0xb8] sm:$0xff]
      %v428 = vld [vmem:[%s2 + $0xc0] sm:$0xff]
      %v429 = vld [vmem:[%s2 + $0xc8] sm:$0xff]
      %v430 = vld [vmem:[%s2 + $0xd0] sm:$0xff]
      %v431 = vld [vmem:[%s2 + $0xd8] sm:$0xff]
      %v432 = vld [vmem:[%s2 + $0xe0] sm:$0xff]
      %v433 = vld [vmem:[%s2 + $0xe8] sm:$0xff]
      %v434 = vld [vmem:[%s2 + $0xf0] sm:$0xff]
      %v435 = vld [vmem:[%s2 + $0xf8] sm:$0xff]
      %436 = vmatprep.subr.mxu0 0.0
      %v437 = vand.u32 %v419, 4294901760
      %438 = vmatpush1.msra.mxu0 %v437
      %439 = vmatprep.subr.mxu0 0.0
      %v440 = vand.u32 %v418, 4294901760
      %441 = vmatpush1.msra.mxu0 %v440
      %442 = vmatprep.subr.mxu0 0.0
      %v443 = vand.u32 %v417, 4294901760
      %444 = vmatpush1.msra.mxu0 %v443
      %445 = vmatprep.subr.mxu0 0.0
      %v446 = vand.u32 %v416, 4294901760
      %447 = vmatpush1.msra.mxu0 %v446
      %448 = vmatprep.subr.mxu0 0.0
      %v449 = vand.u32 %v415, 4294901760
      %450 = vmatpush1.msra.mxu0 %v449
      %451 = vmatprep.subr.mxu0 0.0
      %v452 = vand.u32 %v414, 4294901760
      %453 = vmatpush1.msra.mxu0 %v452
      %454 = vmatprep.subr.mxu0 0.0
      %v455 = vand.u32 %v413, 4294901760
      %456 = vmatpush1.msra.mxu0 %v455
      %457 = vmatprep.subr.mxu0 0.0
      %v458 = vand.u32 %v412, 4294901760
      %459 = vmatpush1.msra.mxu0 %v458
      %460 = vmatprep.subr.mxu0 0.0
      %v461 = vand.u32 %v411, 4294901760
      %462 = vmatpush1.msra.mxu0 %v461
      %463 = vmatprep.subr.mxu0 0.0
      %v464 = vand.u32 %v410, 4294901760
      %465 = vmatpush1.msra.mxu0 %v464
      %466 = vmatprep.subr.mxu0 0.0
      %v467 = vand.u32 %v409, 4294901760
      %468 = vmatpush1.msra.mxu0 %v467
      %469 = vmatprep.subr.mxu0 0.0
      %v470 = vand.u32 %v408, 4294901760
      %471 = vmatpush1.msra.mxu0 %v470
      %472 = vmatprep.subr.mxu0 0.0
      %v473 = vand.u32 %v407, 4294901760
      %474 = vmatpush1.msra.mxu0 %v473
      %475 = vmatprep.subr.mxu0 0.0
      %v476 = vand.u32 %v406, 4294901760
      %477 = vmatpush1.msra.mxu0 %v476
      %478 = vmatprep.subr.mxu0 0.0
      %v479 = vand.u32 %v405, 4294901760
      %480 = vmatpush1.msra.mxu0 %v479
      %481 = vmatprep.subr.mxu0 0.0
      %v482 = vand.u32 %v404, 4294901760
      %483 = vmatpush1.msra.mxu0 %v482
      %484 = vmatprep.subr.mxu0 0.0
      %v485 = vand.u32 %v435, 4294901760
      %486 = vmatpush2.msra.mxu0 %v485
      %487 = vmatprep.subr.mxu0 0.0
      %v488 = vand.u32 %v434, 4294901760
      %489 = vmatpush2.msra.mxu0 %v488
      %490 = vmatprep.subr.mxu0 0.0
      %v491 = vand.u32 %v433, 4294901760
      %492 = vmatpush2.msra.mxu0 %v491
      %493 = vmatprep.subr.mxu0 0.0
      %v494 = vand.u32 %v432, 4294901760
      %495 = vmatpush2.msra.mxu0 %v494
      %496 = vmatprep.subr.mxu0 0.0
      %v497 = vand.u32 %v431, 4294901760
      %498 = vmatpush2.msra.mxu0 %v497
      %499 = vmatprep.subr.mxu0 0.0
      %v500 = vand.u32 %v430, 4294901760
      %501 = vmatpush2.msra.mxu0 %v500
      %502 = vmatprep.subr.mxu0 0.0
      %v503 = vand.u32 %v429, 4294901760
      %504 = vmatpush2.msra.mxu0 %v503
      %505 = vmatprep.subr.mxu0 0.0
      %v506 = vand.u32 %v428, 4294901760
      %507 = vmatpush2.msra.mxu0 %v506
      %508 = vmatprep.subr.mxu0 0.0
      %v509 = vand.u32 %v427, 4294901760
      %510 = vmatpush2.msra.mxu0 %v509
      %511 = vmatprep.subr.mxu0 0.0
      %v512 = vand.u32 %v426, 4294901760
      %513 = vmatpush2.msra.mxu0 %v512
      %514 = vmatprep.subr.mxu0 0.0
      %v515 = vand.u32 %v425, 4294901760
      %516 = vmatpush2.msra.mxu0 %v515
      %517 = vmatprep.subr.mxu0 0.0
      %v518 = vand.u32 %v424, 4294901760
      %519 = vmatpush2.msra.mxu0 %v518
      %520 = vmatprep.subr.mxu0 0.0
      %v521 = vand.u32 %v423, 4294901760
      %522 = vmatpush2.msra.mxu0 %v521
      %523 = vmatprep.subr.mxu0 0.0
      %v524 = vand.u32 %v422, 4294901760
      %525 = vmatpush2.msra.mxu0 %v524
      %526 = vmatprep.subr.mxu0 0.0
      %v527 = vand.u32 %v421, 4294901760
      %528 = vmatpush2.msra.mxu0 %v527
      %529 = vmatprep.subr.mxu0 0.0
      %v530 = vand.u32 %v420, 4294901760
      %531 = vmatpush2.msra.mxu0 %v530
      %v532 = vand.u32 %v357, 4294901760
      %v533 = vsub.f32 %v357, %v532
      %v534 = vand.u32 %v533, 4294901760
      %v535 = vsub.f32 %v533, %v534
      %v536 = vand.u32 %v535, 4294901760
      %537 = vmatprep.mubr.f32.mxu0 %v536
      %v538 = vand.u32 %v320, 4294901760
      %v539 = vsub.f32 %v320, %v538
      %v540 = vand.u32 %v539, 4294901760
      %v541 = vsub.f32 %v539, %v540
      %v542 = vand.u32 %v541, 4294901760
      %543 = vmatmul.mubr.f32.gmra.mxu0 %v542
      %v544 = vpop.f32.mrf.mxu0
      %v545 = vadd.f32 0.0, %v544
      %v546 = vpop.f32.mrf.mxu0
      %v547 = vand.u32 %v359, 4294901760
      %v548 = vsub.f32 %v359, %v547
      %v549 = vand.u32 %v548, 4294901760
      %v550 = vsub.f32 %v548, %v549
      %v551 = vand.u32 %v550, 4294901760
      %552 = vmatprep.mubr.f32.mxu0 %v551
      %v553 = vand.u32 %v321, 4294901760
      %v554 = vsub.f32 %v321, %v553
      %v555 = vand.u32 %v554, 4294901760
      %v556 = vsub.f32 %v554, %v555
      %v557 = vand.u32 %v556, 4294901760
      %558 = vmatmul.mubr.f32.gmra.mxu0 %v557
      %v559 = vpop.f32.mrf.mxu0
      %v560 = vadd.f32 0.0, %v559
      %v561 = vpop.f32.mrf.mxu0
      %v562 = vand.u32 %v361, 4294901760
      %v563 = vsub.f32 %v361, %v562
      %v564 = vand.u32 %v563, 4294901760
      %v565 = vsub.f32 %v563, %v564
      %v566 = vand.u32 %v565, 4294901760
      %567 = vmatprep.mubr.f32.mxu0 %v566
      %v568 = vand.u32 %v322, 4294901760
      %v569 = vsub.f32 %v322, %v568
      %v570 = vand.u32 %v569, 4294901760
      %v571 = vsub.f32 %v569, %v570
      %v572 = vand.u32 %v571, 4294901760
      %573 = vmatmul.mubr.f32.gmra.mxu0 %v572
      %v574 = vpop.f32.mrf.mxu0
      %v575 = vadd.f32 0.0, %v574
      %v576 = vpop.f32.mrf.mxu0
      %v577 = vand.u32 %v363, 4294901760
      %v578 = vsub.f32 %v363, %v577
      %v579 = vand.u32 %v578, 4294901760
      %v580 = vsub.f32 %v578, %v579
      %v581 = vand.u32 %v580, 4294901760
      %582 = vmatprep.mubr.f32.mxu0 %v581
      %v583 = vand.u32 %v323, 4294901760
      %v584 = vsub.f32 %v323, %v583
      %v585 = vand.u32 %v584, 4294901760
      %v586 = vsub.f32 %v584, %v585
      %v587 = vand.u32 %v586, 4294901760
      %588 = vmatmul.mubr.f32.gmra.mxu0 %v587
      %v589 = vpop.f32.mrf.mxu0
      %v590 = vadd.f32 0.0, %v589
      %v591 = vpop.f32.mrf.mxu0
      %v592 = vand.u32 %v365, 4294901760
      %v593 = vsub.f32 %v365, %v592
      %v594 = vand.u32 %v593, 4294901760
      %v595 = vsub.f32 %v593, %v594
      %v596 = vand.u32 %v595, 4294901760
      %597 = vmatprep.mubr.f32.mxu0 %v596
      %v598 = vand.u32 %v324, 4294901760
      %v599 = vsub.f32 %v324, %v598
      %v600 = vand.u32 %v599, 4294901760
      %v601 = vsub.f32 %v599, %v600
      %v602 = vand.u32 %v601, 4294901760
      %603 = vmatmul.mubr.f32.gmra.mxu0 %v602
      %v604 = vpop.f32.mrf.mxu0
      %v605 = vadd.f32 0.0, %v604
      %v606 = vpop.f32.mrf.mxu0
      %v607 = vand.u32 %v367, 4294901760
      %v608 = vsub.f32 %v367, %v607
      %v609 = vand.u32 %v608, 4294901760
      %v610 = vsub.f32 %v608, %v609
      %v611 = vand.u32 %v610, 4294901760
      %612 = vmatprep.mubr.f32.mxu0 %v611
      %v613 = vand.u32 %v325, 4294901760
      %v614 = vsub.f32 %v325, %v613
      %v615 = vand.u32 %v614, 4294901760
      %v616 = vsub.f32 %v614, %v615
      %v617 = vand.u32 %v616, 4294901760
      %618 = vmatmul.mubr.f32.gmra.mxu0 %v617
      %v619 = vpop.f32.mrf.mxu0
      %v620 = vadd.f32 0.0, %v619
      %v621 = vpop.f32.mrf.mxu0
      %v622 = vand.u32 %v369, 4294901760
      %v623 = vsub.f32 %v369, %v622
      %v624 = vand.u32 %v623, 4294901760
      %v625 = vsub.f32 %v623, %v624
      %v626 = vand.u32 %v625, 4294901760
      %627 = vmatprep.mubr.f32.mxu0 %v626
      %v628 = vand.u32 %v326, 4294901760
      %v629 = vsub.f32 %v326, %v628
      %v630 = vand.u32 %v629, 4294901760
      %v631 = vsub.f32 %v629, %v630
      %v632 = vand.u32 %v631, 4294901760
      %633 = vmatmul.mubr.f32.gmra.mxu0 %v632
      %v634 = vpop.f32.mrf.mxu0
      %v635 = vadd.f32 0.0, %v634
      %v636 = vpop.f32.mrf.mxu0
      %v637 = vand.u32 %v371, 4294901760
      %v638 = vsub.f32 %v371, %v637
      %v639 = vand.u32 %v638, 4294901760
      %v640 = vsub.f32 %v638, %v639
      %v641 = vand.u32 %v640, 4294901760
      %642 = vmatprep.mubr.f32.mxu0 %v641
      %v643 = vand.u32 %v327, 4294901760
      %v644 = vsub.f32 %v327, %v643
      %v645 = vand.u32 %v644, 4294901760
      %v646 = vsub.f32 %v644, %v645
      %v647 = vand.u32 %v646, 4294901760
      %648 = vmatmul.mubr.f32.gmra.mxu0 %v647
      %v649 = vpop.f32.mrf.mxu0
      %v650 = vadd.f32 0.0, %v649
      %v651 = vpop.f32.mrf.mxu0
      %v652 = vand.u32 %v373, 4294901760
      %v653 = vsub.f32 %v373, %v652
      %v654 = vand.u32 %v653, 4294901760
      %v655 = vsub.f32 %v653, %v654
      %v656 = vand.u32 %v655, 4294901760
      %657 = vmatprep.mubr.f32.mxu0 %v656
      %v658 = vand.u32 %v328, 4294901760
      %v659 = vsub.f32 %v328, %v658
      %v660 = vand.u32 %v659, 4294901760
      %v661 = vsub.f32 %v659, %v660
      %v662 = vand.u32 %v661, 4294901760
      %663 = vmatmul.mubr.f32.gmra.mxu0 %v662
      %v664 = vpop.f32.mrf.mxu0
      %v665 = vadd.f32 0.0, %v664
      %v666 = vpop.f32.mrf.mxu0
      %v667 = vand.u32 %v375, 4294901760
      %v668 = vsub.f32 %v375, %v667
      %v669 = vand.u32 %v668, 4294901760
      %v670 = vsub.f32 %v668, %v669
      %v671 = vand.u32 %v670, 4294901760
      %672 = vmatprep.mubr.f32.mxu0 %v671
      %v673 = vand.u32 %v329, 4294901760
      %v674 = vsub.f32 %v329, %v673
      %v675 = vand.u32 %v674, 4294901760
      %v676 = vsub.f32 %v674, %v675
      %v677 = vand.u32 %v676, 4294901760
      %678 = vmatmul.mubr.f32.gmra.mxu0 %v677
      %v679 = vpop.f32.mrf.mxu0
      %v680 = vadd.f32 0.0, %v679
      %v681 = vpop.f32.mrf.mxu0
      %v682 = vand.u32 %v377, 4294901760
      %v683 = vsub.f32 %v377, %v682
      %v684 = vand.u32 %v683, 4294901760
      %v685 = vsub.f32 %v683, %v684
      %v686 = vand.u32 %v685, 4294901760
      %687 = vmatprep.mubr.f32.mxu0 %v686
      %v688 = vand.u32 %v330, 4294901760
      %v689 = vsub.f32 %v330, %v688
      %v690 = vand.u32 %v689, 4294901760
      %v691 = vsub.f32 %v689, %v690
      %v692 = vand.u32 %v691, 4294901760
      %693 = vmatmul.mubr.f32.gmra.mxu0 %v692
      %v694 = vpop.f32.mrf.mxu0
      %v695 = vadd.f32 0.0, %v694
      %v696 = vpop.f32.mrf.mxu0
      %v697 = vand.u32 %v379, 4294901760
      %v698 = vsub.f32 %v379, %v697
      %v699 = vand.u32 %v698, 4294901760
      %v700 = vsub.f32 %v698, %v699
      %v701 = vand.u32 %v700, 4294901760
      %702 = vmatprep.mubr.f32.mxu0 %v701
      %v703 = vand.u32 %v331, 4294901760
      %v704 = vsub.f32 %v331, %v703
      %v705 = vand.u32 %v704, 4294901760
      %v706 = vsub.f32 %v704, %v705
      %v707 = vand.u32 %v706, 4294901760
      %708 = vmatmul.mubr.f32.gmra.mxu0 %v707
      %v709 = vpop.f32.mrf.mxu0
      %v710 = vadd.f32 0.0, %v709
      %v711 = vpop.f32.mrf.mxu0
      %v712 = vand.u32 %v381, 4294901760
      %v713 = vsub.f32 %v381, %v712
      %v714 = vand.u32 %v713, 4294901760
      %v715 = vsub.f32 %v713, %v714
      %v716 = vand.u32 %v715, 4294901760
      %717 = vmatprep.mubr.f32.mxu0 %v716
      %v718 = vand.u32 %v332, 4294901760
      %v719 = vsub.f32 %v332, %v718
      %v720 = vand.u32 %v719, 4294901760
      %v721 = vsub.f32 %v719, %v720
      %v722 = vand.u32 %v721, 4294901760
      %723 = vmatmul.mubr.f32.gmra.mxu0 %v722
      %v724 = vpop.f32.mrf.mxu0
      %v725 = vadd.f32 0.0, %v724
      %v726 = vpop.f32.mrf.mxu0
      %v727 = vand.u32 %v383, 4294901760
      %v728 = vsub.f32 %v383, %v727
      %v729 = vand.u32 %v728, 4294901760
      %v730 = vsub.f32 %v728, %v729
      %v731 = vand.u32 %v730, 4294901760
      %732 = vmatprep.mubr.f32.mxu0 %v731
      %v733 = vand.u32 %v333, 4294901760
      %v734 = vsub.f32 %v333, %v733
      %v735 = vand.u32 %v734, 4294901760
      %v736 = vsub.f32 %v734, %v735
      %v737 = vand.u32 %v736, 4294901760
      %738 = vmatmul.mubr.f32.gmra.mxu0 %v737
      %v739 = vpop.f32.mrf.mxu0
      %v740 = vadd.f32 0.0, %v739
      %v741 = vpop.f32.mrf.mxu0
      %v742 = vand.u32 %v385, 4294901760
      %v743 = vsub.f32 %v385, %v742
      %v744 = vand.u32 %v743, 4294901760
      %v745 = vsub.f32 %v743, %v744
      %v746 = vand.u32 %v745, 4294901760
      %747 = vmatprep.mubr.f32.mxu0 %v746
      %v748 = vand.u32 %v334, 4294901760
      %v749 = vsub.f32 %v334, %v748
      %v750 = vand.u32 %v749, 4294901760
      %v751 = vsub.f32 %v749, %v750
      %v752 = vand.u32 %v751, 4294901760
      %753 = vmatmul.mubr.f32.gmra.mxu0 %v752
      %v754 = vpop.f32.mrf.mxu0
      %v755 = vadd.f32 0.0, %v754
      %v756 = vpop.f32.mrf.mxu0
      %v757 = vand.u32 %v387, 4294901760
      %v758 = vsub.f32 %v387, %v757
      %v759 = vand.u32 %v758, 4294901760
      %v760 = vsub.f32 %v758, %v759
      %v761 = vand.u32 %v760, 4294901760
      %762 = vmatprep.mubr.f32.mxu0 %v761
      %v763 = vand.u32 %v335, 4294901760
      %v764 = vsub.f32 %v335, %v763
      %v765 = vand.u32 %v764, 4294901760
      %v766 = vsub.f32 %v764, %v765
      %v767 = vand.u32 %v766, 4294901760
      %768 = vmatmul.mubr.f32.gmra.mxu0 %v767
      %v769 = vpop.f32.mrf.mxu0
      %v770 = vadd.f32 0.0, %v769
      %v771 = vpop.f32.mrf.mxu0
      %772 = vdwg.mxu0
      %773 = vmatprep.subr.mxu0 0.0
      %v774 = vand.u32 %v419, 4294901760
      %v775 = vsub.f32 %v419, %v774
      %v776 = vand.u32 %v775, 4294901760
      %v777 = vsub.f32 %v775, %v776
      %v778 = vand.u32 %v777, 4294901760
      %779 = vmatpush1.msra.mxu0 %v778
      %780 = vmatprep.subr.mxu0 0.0
      %v781 = vand.u32 %v418, 4294901760
      %v782 = vsub.f32 %v418, %v781
      %v783 = vand.u32 %v782, 4294901760
      %v784 = vsub.f32 %v782, %v783
      %v785 = vand.u32 %v784, 4294901760
      %786 = vmatpush1.msra.mxu0 %v785
      %787 = vmatprep.subr.mxu0 0.0
      %v788 = vand.u32 %v417, 4294901760
      %v789 = vsub.f32 %v417, %v788
      %v790 = vand.u32 %v789, 4294901760
      %v791 = vsub.f32 %v789, %v790
      %v792 = vand.u32 %v791, 4294901760
      %793 = vmatpush1.msra.mxu0 %v792
      %794 = vmatprep.subr.mxu0 0.0
      %v795 = vand.u32 %v416, 4294901760
      %v796 = vsub.f32 %v416, %v795
      %v797 = vand.u32 %v796, 4294901760
      %v798 = vsub.f32 %v796, %v797
      %v799 = vand.u32 %v798, 4294901760
      %800 = vmatpush1.msra.mxu0 %v799
      %801 = vmatprep.subr.mxu0 0.0
      %v802 = vand.u32 %v415, 4294901760
      %v803 = vsub.f32 %v415, %v802
      %v804 = vand.u32 %v803, 4294901760
      %v805 = vsub.f32 %v803, %v804
      %v806 = vand.u32 %v805, 4294901760
      %807 = vmatpush1.msra.mxu0 %v806
      %808 = vmatprep.subr.mxu0 0.0
      %v809 = vand.u32 %v414, 4294901760
      %v810 = vsub.f32 %v414, %v809
      %v811 = vand.u32 %v810, 4294901760
      %v812 = vsub.f32 %v810, %v811
      %v813 = vand.u32 %v812, 4294901760
      %814 = vmatpush1.msra.mxu0 %v813
      %815 = vmatprep.subr.mxu0 0.0
      %v816 = vand.u32 %v413, 4294901760
      %v817 = vsub.f32 %v413, %v816
      %v818 = vand.u32 %v817, 4294901760
      %v819 = vsub.f32 %v817, %v818
      %v820 = vand.u32 %v819, 4294901760
      %821 = vmatpush1.msra.mxu0 %v820
      %822 = vmatprep.subr.mxu0 0.0
      %v823 = vand.u32 %v412, 4294901760
      %v824 = vsub.f32 %v412, %v823
      %v825 = vand.u32 %v824, 4294901760
      %v826 = vsub.f32 %v824, %v825
      %v827 = vand.u32 %v826, 4294901760
      %828 = vmatpush1.msra.mxu0 %v827
      %829 = vmatprep.subr.mxu0 0.0
      %v830 = vand.u32 %v411, 4294901760
      %v831 = vsub.f32 %v411, %v830
      %v832 = vand.u32 %v831, 4294901760
      %v833 = vsub.f32 %v831, %v832
      %v834 = vand.u32 %v833, 4294901760
      %835 = vmatpush1.msra.mxu0 %v834
      %836 = vmatprep.subr.mxu0 0.0
      %v837 = vand.u32 %v410, 4294901760
      %v838 = vsub.f32 %v410, %v837
      %v839 = vand.u32 %v838, 4294901760
      %v840 = vsub.f32 %v838, %v839
      %v841 = vand.u32 %v840, 4294901760
      %842 = vmatpush1.msra.mxu0 %v841
      %843 = vmatprep.subr.mxu0 0.0
      %v844 = vand.u32 %v409, 4294901760
      %v845 = vsub.f32 %v409, %v844
      %v846 = vand.u32 %v845, 4294901760
      %v847 = vsub.f32 %v845, %v846
      %v848 = vand.u32 %v847, 4294901760
      %849 = vmatpush1.msra.mxu0 %v848
      %850 = vmatprep.subr.mxu0 0.0
      %v851 = vand.u32 %v408, 4294901760
      %v852 = vsub.f32 %v408, %v851
      %v853 = vand.u32 %v852, 4294901760
      %v854 = vsub.f32 %v852, %v853
      %v855 = vand.u32 %v854, 4294901760
      %856 = vmatpush1.msra.mxu0 %v855
      %857 = vmatprep.subr.mxu0 0.0
      %v858 = vand.u32 %v407, 4294901760
      %v859 = vsub.f32 %v407, %v858
      %v860 = vand.u32 %v859, 4294901760
      %v861 = vsub.f32 %v859, %v860
      %v862 = vand.u32 %v861, 4294901760
      %863 = vmatpush1.msra.mxu0 %v862
      %864 = vmatprep.subr.mxu0 0.0
      %v865 = vand.u32 %v406, 4294901760
      %v866 = vsub.f32 %v406, %v865
      %v867 = vand.u32 %v866, 4294901760
      %v868 = vsub.f32 %v866, %v867
      %v869 = vand.u32 %v868, 4294901760
      %870 = vmatpush1.msra.mxu0 %v869
      %871 = vmatprep.subr.mxu0 0.0
      %v872 = vand.u32 %v405, 4294901760
      %v873 = vsub.f32 %v405, %v872
      %v874 = vand.u32 %v873, 4294901760
      %v875 = vsub.f32 %v873, %v874
      %v876 = vand.u32 %v875, 4294901760
      %877 = vmatpush1.msra.mxu0 %v876
      %878 = vmatprep.subr.mxu0 0.0
      %v879 = vand.u32 %v404, 4294901760
      %v880 = vsub.f32 %v404, %v879
      %v881 = vand.u32 %v880, 4294901760
      %v882 = vsub.f32 %v880, %v881
      %v883 = vand.u32 %v882, 4294901760
      %884 = vmatpush1.msra.mxu0 %v883
      %885 = vmatprep.subr.mxu0 0.0
      %v886 = vand.u32 %v435, 4294901760
      %v887 = vsub.f32 %v435, %v886
      %v888 = vand.u32 %v887, 4294901760
      %v889 = vsub.f32 %v887, %v888
      %v890 = vand.u32 %v889, 4294901760
      %891 = vmatpush2.msra.mxu0 %v890
      %892 = vmatprep.subr.mxu0 0.0
      %v893 = vand.u32 %v434, 4294901760
      %v894 = vsub.f32 %v434, %v893
      %v895 = vand.u32 %v894, 4294901760
      %v896 = vsub.f32 %v894, %v895
      %v897 = vand.u32 %v896, 4294901760
      %898 = vmatpush2.msra.mxu0 %v897
      %899 = vmatprep.subr.mxu0 0.0
      %v900 = vand.u32 %v433, 4294901760
      %v901 = vsub.f32 %v433, %v900
      %v902 = vand.u32 %v901, 4294901760
      %v903 = vsub.f32 %v901, %v902
      %v904 = vand.u32 %v903, 4294901760
      %905 = vmatpush2.msra.mxu0 %v904
      %906 = vmatprep.subr.mxu0 0.0
      %v907 = vand.u32 %v432, 4294901760
      %v908 = vsub.f32 %v432, %v907
      %v909 = vand.u32 %v908, 4294901760
      %v910 = vsub.f32 %v908, %v909
      %v911 = vand.u32 %v910, 4294901760
      %912 = vmatpush2.msra.mxu0 %v911
      %913 = vmatprep.subr.mxu0 0.0
      %v914 = vand.u32 %v431, 4294901760
      %v915 = vsub.f32 %v431, %v914
      %v916 = vand.u32 %v915, 4294901760
      %v917 = vsub.f32 %v915, %v916
      %v918 = vand.u32 %v917, 4294901760
      %919 = vmatpush2.msra.mxu0 %v918
      %920 = vmatprep.subr.mxu0 0.0
      %v921 = vand.u32 %v430, 4294901760
      %v922 = vsub.f32 %v430, %v921
      %v923 = vand.u32 %v922, 4294901760
      %v924 = vsub.f32 %v922, %v923
      %v925 = vand.u32 %v924, 4294901760
      %926 = vmatpush2.msra.mxu0 %v925
      %927 = vmatprep.subr.mxu0 0.0
      %v928 = vand.u32 %v429, 4294901760
      %v929 = vsub.f32 %v429, %v928
      %v930 = vand.u32 %v929, 4294901760
      %v931 = vsub.f32 %v929, %v930
      %v932 = vand.u32 %v931, 4294901760
      %933 = vmatpush2.msra.mxu0 %v932
      %934 = vmatprep.subr.mxu0 0.0
      %v935 = vand.u32 %v428, 4294901760
      %v936 = vsub.f32 %v428, %v935
      %v937 = vand.u32 %v936, 4294901760
      %v938 = vsub.f32 %v936, %v937
      %v939 = vand.u32 %v938, 4294901760
      %940 = vmatpush2.msra.mxu0 %v939
      %941 = vmatprep.subr.mxu0 0.0
      %v942 = vand.u32 %v427, 4294901760
      %v943 = vsub.f32 %v427, %v942
      %v944 = vand.u32 %v943, 4294901760
      %v945 = vsub.f32 %v943, %v944
      %v946 = vand.u32 %v945, 4294901760
      %947 = vmatpush2.msra.mxu0 %v946
      %948 = vmatprep.subr.mxu0 0.0
      %v949 = vand.u32 %v426, 4294901760
      %v950 = vsub.f32 %v426, %v949
      %v951 = vand.u32 %v950, 4294901760
      %v952 = vsub.f32 %v950, %v951
      %v953 = vand.u32 %v952, 4294901760
      %954 = vmatpush2.msra.mxu0 %v953
      %955 = vmatprep.subr.mxu0 0.0
      %v956 = vand.u32 %v425, 4294901760
      %v957 = vsub.f32 %v425, %v956
      %v958 = vand.u32 %v957, 4294901760
      %v959 = vsub.f32 %v957, %v958
      %v960 = vand.u32 %v959, 4294901760
      %961 = vmatpush2.msra.mxu0 %v960
      %962 = vmatprep.subr.mxu0 0.0
      %v963 = vand.u32 %v424, 4294901760
      %v964 = vsub.f32 %v424, %v963
      %v965 = vand.u32 %v964, 4294901760
      %v966 = vsub.f32 %v964, %v965
      %v967 = vand.u32 %v966, 4294901760
      %968 = vmatpush2.msra.mxu0 %v967
      %969 = vmatprep.subr.mxu0 0.0
      %v970 = vand.u32 %v423, 4294901760
      %v971 = vsub.f32 %v423, %v970
      %v972 = vand.u32 %v971, 4294901760
      %v973 = vsub.f32 %v971, %v972
      %v974 = vand.u32 %v973, 4294901760
      %975 = vmatpush2.msra.mxu0 %v974
      %976 = vmatprep.subr.mxu0 0.0
      %v977 = vand.u32 %v422, 4294901760
      %v978 = vsub.f32 %v422, %v977
      %v979 = vand.u32 %v978, 4294901760
      %v980 = vsub.f32 %v978, %v979
      %v981 = vand.u32 %v980, 4294901760
      %982 = vmatpush2.msra.mxu0 %v981
      %983 = vmatprep.subr.mxu0 0.0
      %v984 = vand.u32 %v421, 4294901760
      %v985 = vsub.f32 %v421, %v984
      %v986 = vand.u32 %v985, 4294901760
      %v987 = vsub.f32 %v985, %v986
      %v988 = vand.u32 %v987, 4294901760
      %989 = vmatpush2.msra.mxu0 %v988
      %990 = vmatprep.subr.mxu0 0.0
      %v991 = vand.u32 %v420, 4294901760
      %v992 = vsub.f32 %v420, %v991
      %v993 = vand.u32 %v992, 4294901760
      %v994 = vsub.f32 %v992, %v993
      %v995 = vand.u32 %v994, 4294901760
      %996 = vmatpush2.msra.mxu0 %v995
      %v997 = vand.u32 %v357, 4294901760
      %998 = vmatprep.mubr.f32.mxu0 %v997
      %v999 = vand.u32 %v320, 4294901760
      %1000 = vmatmul.mubr.f32.gmra.mxu0 %v999
      %v1001 = vpop.f32.mrf.mxu0
      %v1002 = vadd.f32 %v545, %v1001
      %v1003 = vpop.f32.mrf.mxu0
      %v1004 = vand.u32 %v359, 4294901760
      %1005 = vmatprep.mubr.f32.mxu0 %v1004
      %v1006 = vand.u32 %v321, 4294901760
      %1007 = vmatmul.mubr.f32.gmra.mxu0 %v1006
      %v1008 = vpop.f32.mrf.mxu0
      %v1009 = vadd.f32 %v560, %v1008
      %v1010 = vpop.f32.mrf.mxu0
      %v1011 = vand.u32 %v361, 4294901760
      %1012 = vmatprep.mubr.f32.mxu0 %v1011
      %v1013 = vand.u32 %v322, 4294901760
      %1014 = vmatmul.mubr.f32.gmra.mxu0 %v1013
      %v1015 = vpop.f32.mrf.mxu0
      %v1016 = vadd.f32 %v575, %v1015
      %v1017 = vpop.f32.mrf.mxu0
      %v1018 = vand.u32 %v363, 4294901760
      %1019 = vmatprep.mubr.f32.mxu0 %v1018
      %v1020 = vand.u32 %v323, 4294901760
      %1021 = vmatmul.mubr.f32.gmra.mxu0 %v1020
      %v1022 = vpop.f32.mrf.mxu0
      %v1023 = vadd.f32 %v590, %v1022
      %v1024 = vpop.f32.mrf.mxu0
      %v1025 = vand.u32 %v365, 4294901760
      %1026 = vmatprep.mubr.f32.mxu0 %v1025
      %v1027 = vand.u32 %v324, 4294901760
      %1028 = vmatmul.mubr.f32.gmra.mxu0 %v1027
      %v1029 = vpop.f32.mrf.mxu0
      %v1030 = vadd.f32 %v605, %v1029
      %v1031 = vpop.f32.mrf.mxu0
      %v1032 = vand.u32 %v367, 4294901760
      %1033 = vmatprep.mubr.f32.mxu0 %v1032
      %v1034 = vand.u32 %v325, 4294901760
      %1035 = vmatmul.mubr.f32.gmra.mxu0 %v1034
      %v1036 = vpop.f32.mrf.mxu0
      %v1037 = vadd.f32 %v620, %v1036
      %v1038 = vpop.f32.mrf.mxu0
      %v1039 = vand.u32 %v369, 4294901760
      %1040 = vmatprep.mubr.f32.mxu0 %v1039
      %v1041 = vand.u32 %v326, 4294901760
      %1042 = vmatmul.mubr.f32.gmra.mxu0 %v1041
      %v1043 = vpop.f32.mrf.mxu0
      %v1044 = vadd.f32 %v635, %v1043
      %v1045 = vpop.f32.mrf.mxu0
      %v1046 = vand.u32 %v371, 4294901760
      %1047 = vmatprep.mubr.f32.mxu0 %v1046
      %v1048 = vand.u32 %v327, 4294901760
      %1049 = vmatmul.mubr.f32.gmra.mxu0 %v1048
      %v1050 = vpop.f32.mrf.mxu0
      %v1051 = vadd.f32 %v650, %v1050
      %v1052 = vpop.f32.mrf.mxu0
      %v1053 = vand.u32 %v373, 4294901760
      %1054 = vmatprep.mubr.f32.mxu0 %v1053
      %v1055 = vand.u32 %v328, 4294901760
      %1056 = vmatmul.mubr.f32.gmra.mxu0 %v1055
      %v1057 = vpop.f32.mrf.mxu0
      %v1058 = vadd.f32 %v665, %v1057
      %v1059 = vpop.f32.mrf.mxu0
      %v1060 = vand.u32 %v375, 4294901760
      %1061 = vmatprep.mubr.f32.mxu0 %v1060
      %v1062 = vand.u32 %v329, 4294901760
      %1063 = vmatmul.mubr.f32.gmra.mxu0 %v1062
      %v1064 = vpop.f32.mrf.mxu0
      %v1065 = vadd.f32 %v680, %v1064
      %v1066 = vpop.f32.mrf.mxu0
      %v1067 = vand.u32 %v377, 4294901760
      %1068 = vmatprep.mubr.f32.mxu0 %v1067
      %v1069 = vand.u32 %v330, 4294901760
      %1070 = vmatmul.mubr.f32.gmra.mxu0 %v1069
      %v1071 = vpop.f32.mrf.mxu0
      %v1072 = vadd.f32 %v695, %v1071
      %v1073 = vpop.f32.mrf.mxu0
      %v1074 = vand.u32 %v379, 4294901760
      %1075 = vmatprep.mubr.f32.mxu0 %v1074
      %v1076 = vand.u32 %v331, 4294901760
      %1077 = vmatmul.mubr.f32.gmra.mxu0 %v1076
      %v1078 = vpop.f32.mrf.mxu0
      %v1079 = vadd.f32 %v710, %v1078
      %v1080 = vpop.f32.mrf.mxu0
      %v1081 = vand.u32 %v381, 4294901760
      %1082 = vmatprep.mubr.f32.mxu0 %v1081
      %v1083 = vand.u32 %v332, 4294901760
      %1084 = vmatmul.mubr.f32.gmra.mxu0 %v1083
      %v1085 = vpop.f32.mrf.mxu0
      %v1086 = vadd.f32 %v725, %v1085
      %v1087 = vpop.f32.mrf.mxu0
      %v1088 = vand.u32 %v383, 4294901760
      %1089 = vmatprep.mubr.f32.mxu0 %v1088
      %v1090 = vand.u32 %v333, 4294901760
      %1091 = vmatmul.mubr.f32.gmra.mxu0 %v1090
      %v1092 = vpop.f32.mrf.mxu0
      %v1093 = vadd.f32 %v740, %v1092
      %v1094 = vpop.f32.mrf.mxu0
      %v1095 = vand.u32 %v385, 4294901760
      %1096 = vmatprep.mubr.f32.mxu0 %v1095
      %v1097 = vand.u32 %v334, 4294901760
      %1098 = vmatmul.mubr.f32.gmra.mxu0 %v1097
      %v1099 = vpop.f32.mrf.mxu0
      %v1100 = vadd.f32 %v755, %v1099
      %v1101 = vpop.f32.mrf.mxu0
      %v1102 = vand.u32 %v387, 4294901760
      %1103 = vmatprep.mubr.f32.mxu0 %v1102
      %v1104 = vand.u32 %v335, 4294901760
      %1105 = vmatmul.mubr.f32.gmra.mxu0 %v1104
      %v1106 = vpop.f32.mrf.mxu0
      %v1107 = vadd.f32 %v770, %v1106
      %v1108 = vpop.f32.mrf.mxu0
      %1109 = vdwg.mxu0
      %1110 = vmatprep.subr.mxu0 0.0
      %v1111 = vand.u32 %v419, 4294901760
      %v1112 = vsub.f32 %v419, %v1111
      %1113 = vmatpush1.msra.mxu0 %v1112
      %1114 = vmatprep.subr.mxu0 0.0
      %v1115 = vand.u32 %v418, 4294901760
      %v1116 = vsub.f32 %v418, %v1115
      %1117 = vmatpush1.msra.mxu0 %v1116
      %1118 = vmatprep.subr.mxu0 0.0
      %v1119 = vand.u32 %v417, 4294901760
      %v1120 = vsub.f32 %v417, %v1119
      %1121 = vmatpush1.msra.mxu0 %v1120
      %1122 = vmatprep.subr.mxu0 0.0
      %v1123 = vand.u32 %v416, 4294901760
      %v1124 = vsub.f32 %v416, %v1123
      %1125 = vmatpush1.msra.mxu0 %v1124
      %1126 = vmatprep.subr.mxu0 0.0
      %v1127 = vand.u32 %v415, 4294901760
      %v1128 = vsub.f32 %v415, %v1127
      %1129 = vmatpush1.msra.mxu0 %v1128
      %1130 = vmatprep.subr.mxu0 0.0
      %v1131 = vand.u32 %v414, 4294901760
      %v1132 = vsub.f32 %v414, %v1131
      %1133 = vmatpush1.msra.mxu0 %v1132
      %1134 = vmatprep.subr.mxu0 0.0
      %v1135 = vand.u32 %v413, 4294901760
      %v1136 = vsub.f32 %v413, %v1135
      %1137 = vmatpush1.msra.mxu0 %v1136
      %1138 = vmatprep.subr.mxu0 0.0
      %v1139 = vand.u32 %v412, 4294901760
      %v1140 = vsub.f32 %v412, %v1139
      %1141 = vmatpush1.msra.mxu0 %v1140
      %1142 = vmatprep.subr.mxu0 0.0
      %v1143 = vand.u32 %v411, 4294901760
      %v1144 = vsub.f32 %v411, %v1143
      %1145 = vmatpush1.msra.mxu0 %v1144
      %1146 = vmatprep.subr.mxu0 0.0
      %v1147 = vand.u32 %v410, 4294901760
      %v1148 = vsub.f32 %v410, %v1147
      %1149 = vmatpush1.msra.mxu0 %v1148
      %1150 = vmatprep.subr.mxu0 0.0
      %v1151 = vand.u32 %v409, 4294901760
      %v1152 = vsub.f32 %v409, %v1151
      %1153 = vmatpush1.msra.mxu0 %v1152
      %1154 = vmatprep.subr.mxu0 0.0
      %v1155 = vand.u32 %v408, 4294901760
      %v1156 = vsub.f32 %v408, %v1155
      %1157 = vmatpush1.msra.mxu0 %v1156
      %1158 = vmatprep.subr.mxu0 0.0
      %v1159 = vand.u32 %v407, 4294901760
      %v1160 = vsub.f32 %v407, %v1159
      %1161 = vmatpush1.msra.mxu0 %v1160
      %1162 = vmatprep.subr.mxu0 0.0
      %v1163 = vand.u32 %v406, 4294901760
      %v1164 = vsub.f32 %v406, %v1163
      %1165 = vmatpush1.msra.mxu0 %v1164
      %1166 = vmatprep.subr.mxu0 0.0
      %v1167 = vand.u32 %v405, 4294901760
      %v1168 = vsub.f32 %v405, %v1167
      %1169 = vmatpush1.msra.mxu0 %v1168
      %1170 = vmatprep.subr.mxu0 0.0
      %v1171 = vand.u32 %v404, 4294901760
      %v1172 = vsub.f32 %v404, %v1171
      %1173 = vmatpush1.msra.mxu0 %v1172
      %1174 = vmatprep.subr.mxu0 0.0
      %v1175 = vand.u32 %v435, 4294901760
      %v1176 = vsub.f32 %v435, %v1175
      %1177 = vmatpush2.msra.mxu0 %v1176
      %1178 = vmatprep.subr.mxu0 0.0
      %v1179 = vand.u32 %v434, 4294901760
      %v1180 = vsub.f32 %v434, %v1179
      %1181 = vmatpush2.msra.mxu0 %v1180
      %1182 = vmatprep.subr.mxu0 0.0
      %v1183 = vand.u32 %v433, 4294901760
      %v1184 = vsub.f32 %v433, %v1183
      %1185 = vmatpush2.msra.mxu0 %v1184
      %1186 = vmatprep.subr.mxu0 0.0
      %v1187 = vand.u32 %v432, 4294901760
      %v1188 = vsub.f32 %v432, %v1187
      %1189 = vmatpush2.msra.mxu0 %v1188
      %1190 = vmatprep.subr.mxu0 0.0
      %v1191 = vand.u32 %v431, 4294901760
      %v1192 = vsub.f32 %v431, %v1191
      %1193 = vmatpush2.msra.mxu0 %v1192
      %1194 = vmatprep.subr.mxu0 0.0
      %v1195 = vand.u32 %v430, 4294901760
      %v1196 = vsub.f32 %v430, %v1195
      %1197 = vmatpush2.msra.mxu0 %v1196
      %1198 = vmatprep.subr.mxu0 0.0
      %v1199 = vand.u32 %v429, 4294901760
      %v1200 = vsub.f32 %v429, %v1199
      %1201 = vmatpush2.msra.mxu0 %v1200
      %1202 = vmatprep.subr.mxu0 0.0
      %v1203 = vand.u32 %v428, 4294901760
      %v1204 = vsub.f32 %v428, %v1203
      %1205 = vmatpush2.msra.mxu0 %v1204
      %1206 = vmatprep.subr.mxu0 0.0
      %v1207 = vand.u32 %v427, 4294901760
      %v1208 = vsub.f32 %v427, %v1207
      %1209 = vmatpush2.msra.mxu0 %v1208
      %1210 = vmatprep.subr.mxu0 0.0
      %v1211 = vand.u32 %v426, 4294901760
      %v1212 = vsub.f32 %v426, %v1211
      %1213 = vmatpush2.msra.mxu0 %v1212
      %1214 = vmatprep.subr.mxu0 0.0
      %v1215 = vand.u32 %v425, 4294901760
      %v1216 = vsub.f32 %v425, %v1215
      %1217 = vmatpush2.msra.mxu0 %v1216
      %1218 = vmatprep.subr.mxu0 0.0
      %v1219 = vand.u32 %v424, 4294901760
      %v1220 = vsub.f32 %v424, %v1219
      %1221 = vmatpush2.msra.mxu0 %v1220
      %1222 = vmatprep.subr.mxu0 0.0
      %v1223 = vand.u32 %v423, 4294901760
      %v1224 = vsub.f32 %v423, %v1223
      %1225 = vmatpush2.msra.mxu0 %v1224
      %1226 = vmatprep.subr.mxu0 0.0
      %v1227 = vand.u32 %v422, 4294901760
      %v1228 = vsub.f32 %v422, %v1227
      %1229 = vmatpush2.msra.mxu0 %v1228
      %1230 = vmatprep.subr.mxu0 0.0
      %v1231 = vand.u32 %v421, 4294901760
      %v1232 = vsub.f32 %v421, %v1231
      %1233 = vmatpush2.msra.mxu0 %v1232
      %1234 = vmatprep.subr.mxu0 0.0
      %v1235 = vand.u32 %v420, 4294901760
      %v1236 = vsub.f32 %v420, %v1235
      %1237 = vmatpush2.msra.mxu0 %v1236
      %v1238 = vand.u32 %v357, 4294901760
      %v1239 = vsub.f32 %v357, %v1238
      %1240 = vmatprep.mubr.f32.mxu0 %v1239
      %v1241 = vand.u32 %v320, 4294901760
      %v1242 = vsub.f32 %v320, %v1241
      %1243 = vmatmul.mubr.f32.gmra.mxu0 %v1242
      %v1244 = vpop.f32.mrf.mxu0
      %v1245 = vadd.f32 %v1002, %v1244
      %v1246 = vpop.f32.mrf.mxu0
      %v1247 = vand.u32 %v359, 4294901760
      %v1248 = vsub.f32 %v359, %v1247
      %1249 = vmatprep.mubr.f32.mxu0 %v1248
      %v1250 = vand.u32 %v321, 4294901760
      %v1251 = vsub.f32 %v321, %v1250
      %1252 = vmatmul.mubr.f32.gmra.mxu0 %v1251
      %v1253 = vpop.f32.mrf.mxu0
      %v1254 = vadd.f32 %v1009, %v1253
      %v1255 = vpop.f32.mrf.mxu0
      %v1256 = vand.u32 %v361, 4294901760
      %v1257 = vsub.f32 %v361, %v1256
      %1258 = vmatprep.mubr.f32.mxu0 %v1257
      %v1259 = vand.u32 %v322, 4294901760
      %v1260 = vsub.f32 %v322, %v1259
      %1261 = vmatmul.mubr.f32.gmra.mxu0 %v1260
      %v1262 = vpop.f32.mrf.mxu0
      %v1263 = vadd.f32 %v1016, %v1262
      %v1264 = vpop.f32.mrf.mxu0
      %v1265 = vand.u32 %v363, 4294901760
      %v1266 = vsub.f32 %v363, %v1265
      %1267 = vmatprep.mubr.f32.mxu0 %v1266
      %v1268 = vand.u32 %v323, 4294901760
      %v1269 = vsub.f32 %v323, %v1268
      %1270 = vmatmul.mubr.f32.gmra.mxu0 %v1269
      %v1271 = vpop.f32.mrf.mxu0
      %v1272 = vadd.f32 %v1023, %v1271
      %v1273 = vpop.f32.mrf.mxu0
      %v1274 = vand.u32 %v365, 4294901760
      %v1275 = vsub.f32 %v365, %v1274
      %1276 = vmatprep.mubr.f32.mxu0 %v1275
      %v1277 = vand.u32 %v324, 4294901760
      %v1278 = vsub.f32 %v324, %v1277
      %1279 = vmatmul.mubr.f32.gmra.mxu0 %v1278
      %v1280 = vpop.f32.mrf.mxu0
      %v1281 = vadd.f32 %v1030, %v1280
      %v1282 = vpop.f32.mrf.mxu0
      %v1283 = vand.u32 %v367, 4294901760
      %v1284 = vsub.f32 %v367, %v1283
      %1285 = vmatprep.mubr.f32.mxu0 %v1284
      %v1286 = vand.u32 %v325, 4294901760
      %v1287 = vsub.f32 %v325, %v1286
      %1288 = vmatmul.mubr.f32.gmra.mxu0 %v1287
      %v1289 = vpop.f32.mrf.mxu0
      %v1290 = vadd.f32 %v1037, %v1289
      %v1291 = vpop.f32.mrf.mxu0
      %v1292 = vand.u32 %v369, 4294901760
      %v1293 = vsub.f32 %v369, %v1292
      %1294 = vmatprep.mubr.f32.mxu0 %v1293
      %v1295 = vand.u32 %v326, 4294901760
      %v1296 = vsub.f32 %v326, %v1295
      %1297 = vmatmul.mubr.f32.gmra.mxu0 %v1296
      %v1298 = vpop.f32.mrf.mxu0
      %v1299 = vadd.f32 %v1044, %v1298
      %v1300 = vpop.f32.mrf.mxu0
      %v1301 = vand.u32 %v371, 4294901760
      %v1302 = vsub.f32 %v371, %v1301
      %1303 = vmatprep.mubr.f32.mxu0 %v1302
      %v1304 = vand.u32 %v327, 4294901760
      %v1305 = vsub.f32 %v327, %v1304
      %1306 = vmatmul.mubr.f32.gmra.mxu0 %v1305
      %v1307 = vpop.f32.mrf.mxu0
      %v1308 = vadd.f32 %v1051, %v1307
      %v1309 = vpop.f32.mrf.mxu0
      %v1310 = vand.u32 %v373, 4294901760
      %v1311 = vsub.f32 %v373, %v1310
      %1312 = vmatprep.mubr.f32.mxu0 %v1311
      %v1313 = vand.u32 %v328, 4294901760
      %v1314 = vsub.f32 %v328, %v1313
      %1315 = vmatmul.mubr.f32.gmra.mxu0 %v1314
      %v1316 = vpop.f32.mrf.mxu0
      %v1317 = vadd.f32 %v1058, %v1316
      %v1318 = vpop.f32.mrf.mxu0
      %v1319 = vand.u32 %v375, 4294901760
      %v1320 = vsub.f32 %v375, %v1319
      %1321 = vmatprep.mubr.f32.mxu0 %v1320
      %v1322 = vand.u32 %v329, 4294901760
      %v1323 = vsub.f32 %v329, %v1322
      %1324 = vmatmul.mubr.f32.gmra.mxu0 %v1323
      %v1325 = vpop.f32.mrf.mxu0
      %v1326 = vadd.f32 %v1065, %v1325
      %v1327 = vpop.f32.mrf.mxu0
      %v1328 = vand.u32 %v377, 4294901760
      %v1329 = vsub.f32 %v377, %v1328
      %1330 = vmatprep.mubr.f32.mxu0 %v1329
      %v1331 = vand.u32 %v330, 4294901760
      %v1332 = vsub.f32 %v330, %v1331
      %1333 = vmatmul.mubr.f32.gmra.mxu0 %v1332
      %v1334 = vpop.f32.mrf.mxu0
      %v1335 = vadd.f32 %v1072, %v1334
      %v1336 = vpop.f32.mrf.mxu0
      %v1337 = vand.u32 %v379, 4294901760
      %v1338 = vsub.f32 %v379, %v1337
      %1339 = vmatprep.mubr.f32.mxu0 %v1338
      %v1340 = vand.u32 %v331, 4294901760
      %v1341 = vsub.f32 %v331, %v1340
      %1342 = vmatmul.mubr.f32.gmra.mxu0 %v1341
      %v1343 = vpop.f32.mrf.mxu0
      %v1344 = vadd.f32 %v1079, %v1343
      %v1345 = vpop.f32.mrf.mxu0
      %v1346 = vand.u32 %v381, 4294901760
      %v1347 = vsub.f32 %v381, %v1346
      %1348 = vmatprep.mubr.f32.mxu0 %v1347
      %v1349 = vand.u32 %v332, 4294901760
      %v1350 = vsub.f32 %v332, %v1349
      %1351 = vmatmul.mubr.f32.gmra.mxu0 %v1350
      %v1352 = vpop.f32.mrf.mxu0
      %v1353 = vadd.f32 %v1086, %v1352
      %v1354 = vpop.f32.mrf.mxu0
      %v1355 = vand.u32 %v383, 4294901760
      %v1356 = vsub.f32 %v383, %v1355
      %1357 = vmatprep.mubr.f32.mxu0 %v1356
      %v1358 = vand.u32 %v333, 4294901760
      %v1359 = vsub.f32 %v333, %v1358
      %1360 = vmatmul.mubr.f32.gmra.mxu0 %v1359
      %v1361 = vpop.f32.mrf.mxu0
      %v1362 = vadd.f32 %v1093, %v1361
      %v1363 = vpop.f32.mrf.mxu0
      %v1364 = vand.u32 %v385, 4294901760
      %v1365 = vsub.f32 %v385, %v1364
      %1366 = vmatprep.mubr.f32.mxu0 %v1365
      %v1367 = vand.u32 %v334, 4294901760
      %v1368 = vsub.f32 %v334, %v1367
      %1369 = vmatmul.mubr.f32.gmra.mxu0 %v1368
      %v1370 = vpop.f32.mrf.mxu0
      %v1371 = vadd.f32 %v1100, %v1370
      %v1372 = vpop.f32.mrf.mxu0
      %v1373 = vand.u32 %v387, 4294901760
      %v1374 = vsub.f32 %v387, %v1373
      %1375 = vmatprep.mubr.f32.mxu0 %v1374
      %v1376 = vand.u32 %v335, 4294901760
      %v1377 = vsub.f32 %v335, %v1376
      %1378 = vmatmul.mubr.f32.gmra.mxu0 %v1377
      %v1379 = vpop.f32.mrf.mxu0
      %v1380 = vadd.f32 %v1107, %v1379
      %v1381 = vpop.f32.mrf.mxu0
      %1382 = vdwg.mxu0
      %1383 = vmatprep.subr.mxu0 0.0
      %v1384 = vand.u32 %v419, 4294901760
      %1385 = vmatpush1.msra.mxu0 %v1384
      %1386 = vmatprep.subr.mxu0 0.0
      %v1387 = vand.u32 %v418, 4294901760
      %1388 = vmatpush1.msra.mxu0 %v1387
      %1389 = vmatprep.subr.mxu0 0.0
      %v1390 = vand.u32 %v417, 4294901760
      %1391 = vmatpush1.msra.mxu0 %v1390
      %1392 = vmatprep.subr.mxu0 0.0
      %v1393 = vand.u32 %v416, 4294901760
      %1394 = vmatpush1.msra.mxu0 %v1393
      %1395 = vmatprep.subr.mxu0 0.0
      %v1396 = vand.u32 %v415, 4294901760
      %1397 = vmatpush1.msra.mxu0 %v1396
      %1398 = vmatprep.subr.mxu0 0.0
      %v1399 = vand.u32 %v414, 4294901760
      %1400 = vmatpush1.msra.mxu0 %v1399
      %1401 = vmatprep.subr.mxu0 0.0
      %v1402 = vand.u32 %v413, 4294901760
      %1403 = vmatpush1.msra.mxu0 %v1402
      %1404 = vmatprep.subr.mxu0 0.0
      %v1405 = vand.u32 %v412, 4294901760
      %1406 = vmatpush1.msra.mxu0 %v1405
      %1407 = vmatprep.subr.mxu0 0.0
      %v1408 = vand.u32 %v411, 4294901760
      %1409 = vmatpush1.msra.mxu0 %v1408
      %1410 = vmatprep.subr.mxu0 0.0
      %v1411 = vand.u32 %v410, 4294901760
      %1412 = vmatpush1.msra.mxu0 %v1411
      %1413 = vmatprep.subr.mxu0 0.0
      %v1414 = vand.u32 %v409, 4294901760
      %1415 = vmatpush1.msra.mxu0 %v1414
      %1416 = vmatprep.subr.mxu0 0.0
      %v1417 = vand.u32 %v408, 4294901760
      %1418 = vmatpush1.msra.mxu0 %v1417
      %1419 = vmatprep.subr.mxu0 0.0
      %v1420 = vand.u32 %v407, 4294901760
      %1421 = vmatpush1.msra.mxu0 %v1420
      %1422 = vmatprep.subr.mxu0 0.0
      %v1423 = vand.u32 %v406, 4294901760
      %1424 = vmatpush1.msra.mxu0 %v1423
      %1425 = vmatprep.subr.mxu0 0.0
      %v1426 = vand.u32 %v405, 4294901760
      %1427 = vmatpush1.msra.mxu0 %v1426
      %1428 = vmatprep.subr.mxu0 0.0
      %v1429 = vand.u32 %v404, 4294901760
      %1430 = vmatpush1.msra.mxu0 %v1429
      %1431 = vmatprep.subr.mxu0 0.0
      %v1432 = vand.u32 %v435, 4294901760
      %1433 = vmatpush2.msra.mxu0 %v1432
      %1434 = vmatprep.subr.mxu0 0.0
      %v1435 = vand.u32 %v434, 4294901760
      %1436 = vmatpush2.msra.mxu0 %v1435
      %1437 = vmatprep.subr.mxu0 0.0
      %v1438 = vand.u32 %v433, 4294901760
      %1439 = vmatpush2.msra.mxu0 %v1438
      %1440 = vmatprep.subr.mxu0 0.0
      %v1441 = vand.u32 %v432, 4294901760
      %1442 = vmatpush2.msra.mxu0 %v1441
      %1443 = vmatprep.subr.mxu0 0.0
      %v1444 = vand.u32 %v431, 4294901760
      %1445 = vmatpush2.msra.mxu0 %v1444
      %1446 = vmatprep.subr.mxu0 0.0
      %v1447 = vand.u32 %v430, 4294901760
      %1448 = vmatpush2.msra.mxu0 %v1447
      %1449 = vmatprep.subr.mxu0 0.0
      %v1450 = vand.u32 %v429, 4294901760
      %1451 = vmatpush2.msra.mxu0 %v1450
      %1452 = vmatprep.subr.mxu0 0.0
      %v1453 = vand.u32 %v428, 4294901760
      %1454 = vmatpush2.msra.mxu0 %v1453
      %1455 = vmatprep.subr.mxu0 0.0
      %v1456 = vand.u32 %v427, 4294901760
      %1457 = vmatpush2.msra.mxu0 %v1456
      %1458 = vmatprep.subr.mxu0 0.0
      %v1459 = vand.u32 %v426, 4294901760
      %1460 = vmatpush2.msra.mxu0 %v1459
      %1461 = vmatprep.subr.mxu0 0.0
      %v1462 = vand.u32 %v425, 4294901760
      %1463 = vmatpush2.msra.mxu0 %v1462
      %1464 = vmatprep.subr.mxu0 0.0
      %v1465 = vand.u32 %v424, 4294901760
      %1466 = vmatpush2.msra.mxu0 %v1465
      %1467 = vmatprep.subr.mxu0 0.0
      %v1468 = vand.u32 %v423, 4294901760
      %1469 = vmatpush2.msra.mxu0 %v1468
      %1470 = vmatprep.subr.mxu0 0.0
      %v1471 = vand.u32 %v422, 4294901760
      %1472 = vmatpush2.msra.mxu0 %v1471
      %1473 = vmatprep.subr.mxu0 0.0
      %v1474 = vand.u32 %v421, 4294901760
      %1475 = vmatpush2.msra.mxu0 %v1474
      %1476 = vmatprep.subr.mxu0 0.0
      %v1477 = vand.u32 %v420, 4294901760
      %1478 = vmatpush2.msra.mxu0 %v1477
      %v1479 = vand.u32 %v357, 4294901760
      %v1480 = vsub.f32 %v357, %v1479
      %v1481 = vand.u32 %v1480, 4294901760
      %1482 = vmatprep.mubr.f32.mxu0 %v1481
      %v1483 = vand.u32 %v320, 4294901760
      %v1484 = vsub.f32 %v320, %v1483
      %v1485 = vand.u32 %v1484, 4294901760
      %1486 = vmatmul.mubr.f32.gmra.mxu0 %v1485
      %v1487 = vpop.f32.mrf.mxu0
      %v1488 = vadd.f32 %v1245, %v1487
      %v1489 = vpop.f32.mrf.mxu0
      %v1490 = vand.u32 %v359, 4294901760
      %v1491 = vsub.f32 %v359, %v1490
      %v1492 = vand.u32 %v1491, 4294901760
      %1493 = vmatprep.mubr.f32.mxu0 %v1492
      %v1494 = vand.u32 %v321, 4294901760
      %v1495 = vsub.f32 %v321, %v1494
      %v1496 = vand.u32 %v1495, 4294901760
      %1497 = vmatmul.mubr.f32.gmra.mxu0 %v1496
      %v1498 = vpop.f32.mrf.mxu0
      %v1499 = vadd.f32 %v1254, %v1498
      %v1500 = vpop.f32.mrf.mxu0
      %v1501 = vand.u32 %v361, 4294901760
      %v1502 = vsub.f32 %v361, %v1501
      %v1503 = vand.u32 %v1502, 4294901760
      %1504 = vmatprep.mubr.f32.mxu0 %v1503
      %v1505 = vand.u32 %v322, 4294901760
      %v1506 = vsub.f32 %v322, %v1505
      %v1507 = vand.u32 %v1506, 4294901760
      %1508 = vmatmul.mubr.f32.gmra.mxu0 %v1507
      %v1509 = vpop.f32.mrf.mxu0
      %v1510 = vadd.f32 %v1263, %v1509
      %v1511 = vpop.f32.mrf.mxu0
      %v1512 = vand.u32 %v363, 4294901760
      %v1513 = vsub.f32 %v363, %v1512
      %v1514 = vand.u32 %v1513, 4294901760
      %1515 = vmatprep.mubr.f32.mxu0 %v1514
      %v1516 = vand.u32 %v323, 4294901760
      %v1517 = vsub.f32 %v323, %v1516
      %v1518 = vand.u32 %v1517, 4294901760
      %1519 = vmatmul.mubr.f32.gmra.mxu0 %v1518
      %v1520 = vpop.f32.mrf.mxu0
      %v1521 = vadd.f32 %v1272, %v1520
      %v1522 = vpop.f32.mrf.mxu0
      %v1523 = vand.u32 %v365, 4294901760
      %v1524 = vsub.f32 %v365, %v1523
      %v1525 = vand.u32 %v1524, 4294901760
      %1526 = vmatprep.mubr.f32.mxu0 %v1525
      %v1527 = vand.u32 %v324, 4294901760
      %v1528 = vsub.f32 %v324, %v1527
      %v1529 = vand.u32 %v1528, 4294901760
      %1530 = vmatmul.mubr.f32.gmra.mxu0 %v1529
      %v1531 = vpop.f32.mrf.mxu0
      %v1532 = vadd.f32 %v1281, %v1531
      %v1533 = vpop.f32.mrf.mxu0
      %v1534 = vand.u32 %v367, 4294901760
      %v1535 = vsub.f32 %v367, %v1534
      %v1536 = vand.u32 %v1535, 4294901760
      %1537 = vmatprep.mubr.f32.mxu0 %v1536
      %v1538 = vand.u32 %v325, 4294901760
      %v1539 = vsub.f32 %v325, %v1538
      %v1540 = vand.u32 %v1539, 4294901760
      %1541 = vmatmul.mubr.f32.gmra.mxu0 %v1540
      %v1542 = vpop.f32.mrf.mxu0
      %v1543 = vadd.f32 %v1290, %v1542
      %v1544 = vpop.f32.mrf.mxu0
      %v1545 = vand.u32 %v369, 4294901760
      %v1546 = vsub.f32 %v369, %v1545
      %v1547 = vand.u32 %v1546, 4294901760
      %1548 = vmatprep.mubr.f32.mxu0 %v1547
      %v1549 = vand.u32 %v326, 4294901760
      %v1550 = vsub.f32 %v326, %v1549
      %v1551 = vand.u32 %v1550, 4294901760
      %1552 = vmatmul.mubr.f32.gmra.mxu0 %v1551
      %v1553 = vpop.f32.mrf.mxu0
      %v1554 = vadd.f32 %v1299, %v1553
      %v1555 = vpop.f32.mrf.mxu0
      %v1556 = vand.u32 %v371, 4294901760
      %v1557 = vsub.f32 %v371, %v1556
      %v1558 = vand.u32 %v1557, 4294901760
      %1559 = vmatprep.mubr.f32.mxu0 %v1558
      %v1560 = vand.u32 %v327, 4294901760
      %v1561 = vsub.f32 %v327, %v1560
      %v1562 = vand.u32 %v1561, 4294901760
      %1563 = vmatmul.mubr.f32.gmra.mxu0 %v1562
      %v1564 = vpop.f32.mrf.mxu0
      %v1565 = vadd.f32 %v1308, %v1564
      %v1566 = vpop.f32.mrf.mxu0
      %v1567 = vand.u32 %v373, 4294901760
      %v1568 = vsub.f32 %v373, %v1567
      %v1569 = vand.u32 %v1568, 4294901760
      %1570 = vmatprep.mubr.f32.mxu0 %v1569
      %v1571 = vand.u32 %v328, 4294901760
      %v1572 = vsub.f32 %v328, %v1571
      %v1573 = vand.u32 %v1572, 4294901760
      %1574 = vmatmul.mubr.f32.gmra.mxu0 %v1573
      %v1575 = vpop.f32.mrf.mxu0
      %v1576 = vadd.f32 %v1317, %v1575
      %v1577 = vpop.f32.mrf.mxu0
      %v1578 = vand.u32 %v375, 4294901760
      %v1579 = vsub.f32 %v375, %v1578
      %v1580 = vand.u32 %v1579, 4294901760
      %1581 = vmatprep.mubr.f32.mxu0 %v1580
      %v1582 = vand.u32 %v329, 4294901760
      %v1583 = vsub.f32 %v329, %v1582
      %v1584 = vand.u32 %v1583, 4294901760
      %1585 = vmatmul.mubr.f32.gmra.mxu0 %v1584
      %v1586 = vpop.f32.mrf.mxu0
      %v1587 = vadd.f32 %v1326, %v1586
      %v1588 = vpop.f32.mrf.mxu0
      %v1589 = vand.u32 %v377, 4294901760
      %v1590 = vsub.f32 %v377, %v1589
      %v1591 = vand.u32 %v1590, 4294901760
      %1592 = vmatprep.mubr.f32.mxu0 %v1591
      %v1593 = vand.u32 %v330, 4294901760
      %v1594 = vsub.f32 %v330, %v1593
      %v1595 = vand.u32 %v1594, 4294901760
      %1596 = vmatmul.mubr.f32.gmra.mxu0 %v1595
      %v1597 = vpop.f32.mrf.mxu0
      %v1598 = vadd.f32 %v1335, %v1597
      %v1599 = vpop.f32.mrf.mxu0
      %v1600 = vand.u32 %v379, 4294901760
      %v1601 = vsub.f32 %v379, %v1600
      %v1602 = vand.u32 %v1601, 4294901760
      %1603 = vmatprep.mubr.f32.mxu0 %v1602
      %v1604 = vand.u32 %v331, 4294901760
      %v1605 = vsub.f32 %v331, %v1604
      %v1606 = vand.u32 %v1605, 4294901760
      %1607 = vmatmul.mubr.f32.gmra.mxu0 %v1606
      %v1608 = vpop.f32.mrf.mxu0
      %v1609 = vadd.f32 %v1344, %v1608
      %v1610 = vpop.f32.mrf.mxu0
      %v1611 = vand.u32 %v381, 4294901760
      %v1612 = vsub.f32 %v381, %v1611
      %v1613 = vand.u32 %v1612, 4294901760
      %1614 = vmatprep.mubr.f32.mxu0 %v1613
      %v1615 = vand.u32 %v332, 4294901760
      %v1616 = vsub.f32 %v332, %v1615
      %v1617 = vand.u32 %v1616, 4294901760
      %1618 = vmatmul.mubr.f32.gmra.mxu0 %v1617
      %v1619 = vpop.f32.mrf.mxu0
      %v1620 = vadd.f32 %v1353, %v1619
      %v1621 = vpop.f32.mrf.mxu0
      %v1622 = vand.u32 %v383, 4294901760
      %v1623 = vsub.f32 %v383, %v1622
      %v1624 = vand.u32 %v1623, 4294901760
      %1625 = vmatprep.mubr.f32.mxu0 %v1624
      %v1626 = vand.u32 %v333, 4294901760
      %v1627 = vsub.f32 %v333, %v1626
      %v1628 = vand.u32 %v1627, 4294901760
      %1629 = vmatmul.mubr.f32.gmra.mxu0 %v1628
      %v1630 = vpop.f32.mrf.mxu0
      %v1631 = vadd.f32 %v1362, %v1630
      %v1632 = vpop.f32.mrf.mxu0
      %v1633 = vand.u32 %v385, 4294901760
      %v1634 = vsub.f32 %v385, %v1633
      %v1635 = vand.u32 %v1634, 4294901760
      %1636 = vmatprep.mubr.f32.mxu0 %v1635
      %v1637 = vand.u32 %v334, 4294901760
      %v1638 = vsub.f32 %v334, %v1637
      %v1639 = vand.u32 %v1638, 4294901760
      %1640 = vmatmul.mubr.f32.gmra.mxu0 %v1639
      %v1641 = vpop.f32.mrf.mxu0
      %v1642 = vadd.f32 %v1371, %v1641
      %v1643 = vpop.f32.mrf.mxu0
      %v1644 = vand.u32 %v387, 4294901760
      %v1645 = vsub.f32 %v387, %v1644
      %v1646 = vand.u32 %v1645, 4294901760
      %1647 = vmatprep.mubr.f32.mxu0 %v1646
      %v1648 = vand.u32 %v335, 4294901760
      %v1649 = vsub.f32 %v335, %v1648
      %v1650 = vand.u32 %v1649, 4294901760
      %1651 = vmatmul.mubr.f32.gmra.mxu0 %v1650
      %v1652 = vpop.f32.mrf.mxu0
      %v1653 = vadd.f32 %v1380, %v1652
      %v1654 = vpop.f32.mrf.mxu0
      %1655 = vdwg.mxu0
      %1656 = vmatprep.subr.mxu0 0.0
      %v1657 = vand.u32 %v419, 4294901760
      %v1658 = vsub.f32 %v419, %v1657
      %v1659 = vand.u32 %v1658, 4294901760
      %1660 = vmatpush1.msra.mxu0 %v1659
      %1661 = vmatprep.subr.mxu0 0.0
      %v1662 = vand.u32 %v418, 4294901760
      %v1663 = vsub.f32 %v418, %v1662
      %v1664 = vand.u32 %v1663, 4294901760
      %1665 = vmatpush1.msra.mxu0 %v1664
      %1666 = vmatprep.subr.mxu0 0.0
      %v1667 = vand.u32 %v417, 4294901760
      %v1668 = vsub.f32 %v417, %v1667
      %v1669 = vand.u32 %v1668, 4294901760
      %1670 = vmatpush1.msra.mxu0 %v1669
      %1671 = vmatprep.subr.mxu0 0.0
      %v1672 = vand.u32 %v416, 4294901760
      %v1673 = vsub.f32 %v416, %v1672
      %v1674 = vand.u32 %v1673, 4294901760
      %1675 = vmatpush1.msra.mxu0 %v1674
      %1676 = vmatprep.subr.mxu0 0.0
      %v1677 = vand.u32 %v415, 4294901760
      %v1678 = vsub.f32 %v415, %v1677
      %v1679 = vand.u32 %v1678, 4294901760
      %1680 = vmatpush1.msra.mxu0 %v1679
      %1681 = vmatprep.subr.mxu0 0.0
      %v1682 = vand.u32 %v414, 4294901760
      %v1683 = vsub.f32 %v414, %v1682
      %v1684 = vand.u32 %v1683, 4294901760
      %1685 = vmatpush1.msra.mxu0 %v1684
      %1686 = vmatprep.subr.mxu0 0.0
      %v1687 = vand.u32 %v413, 4294901760
      %v1688 = vsub.f32 %v413, %v1687
      %v1689 = vand.u32 %v1688, 4294901760
      %1690 = vmatpush1.msra.mxu0 %v1689
      %1691 = vmatprep.subr.mxu0 0.0
      %v1692 = vand.u32 %v412, 4294901760
      %v1693 = vsub.f32 %v412, %v1692
      %v1694 = vand.u32 %v1693, 4294901760
      %1695 = vmatpush1.msra.mxu0 %v1694
      %1696 = vmatprep.subr.mxu0 0.0
      %v1697 = vand.u32 %v411, 4294901760
      %v1698 = vsub.f32 %v411, %v1697
      %v1699 = vand.u32 %v1698, 4294901760
      %1700 = vmatpush1.msra.mxu0 %v1699
      %1701 = vmatprep.subr.mxu0 0.0
      %v1702 = vand.u32 %v410, 4294901760
      %v1703 = vsub.f32 %v410, %v1702
      %v1704 = vand.u32 %v1703, 4294901760
      %1705 = vmatpush1.msra.mxu0 %v1704
      %1706 = vmatprep.subr.mxu0 0.0
      %v1707 = vand.u32 %v409, 4294901760
      %v1708 = vsub.f32 %v409, %v1707
      %v1709 = vand.u32 %v1708, 4294901760
      %1710 = vmatpush1.msra.mxu0 %v1709
      %1711 = vmatprep.subr.mxu0 0.0
      %v1712 = vand.u32 %v408, 4294901760
      %v1713 = vsub.f32 %v408, %v1712
      %v1714 = vand.u32 %v1713, 4294901760
      %1715 = vmatpush1.msra.mxu0 %v1714
      %1716 = vmatprep.subr.mxu0 0.0
      %v1717 = vand.u32 %v407, 4294901760
      %v1718 = vsub.f32 %v407, %v1717
      %v1719 = vand.u32 %v1718, 4294901760
      %1720 = vmatpush1.msra.mxu0 %v1719
      %1721 = vmatprep.subr.mxu0 0.0
      %v1722 = vand.u32 %v406, 4294901760
      %v1723 = vsub.f32 %v406, %v1722
      %v1724 = vand.u32 %v1723, 4294901760
      %1725 = vmatpush1.msra.mxu0 %v1724
      %1726 = vmatprep.subr.mxu0 0.0
      %v1727 = vand.u32 %v405, 4294901760
      %v1728 = vsub.f32 %v405, %v1727
      %v1729 = vand.u32 %v1728, 4294901760
      %1730 = vmatpush1.msra.mxu0 %v1729
      %1731 = vmatprep.subr.mxu0 0.0
      %v1732 = vand.u32 %v404, 4294901760
      %v1733 = vsub.f32 %v404, %v1732
      %v1734 = vand.u32 %v1733, 4294901760
      %1735 = vmatpush1.msra.mxu0 %v1734
      %1736 = vmatprep.subr.mxu0 0.0
      %v1737 = vand.u32 %v435, 4294901760
      %v1738 = vsub.f32 %v435, %v1737
      %v1739 = vand.u32 %v1738, 4294901760
      %1740 = vmatpush2.msra.mxu0 %v1739
      %1741 = vmatprep.subr.mxu0 0.0
      %v1742 = vand.u32 %v434, 4294901760
      %v1743 = vsub.f32 %v434, %v1742
      %v1744 = vand.u32 %v1743, 4294901760
      %1745 = vmatpush2.msra.mxu0 %v1744
      %1746 = vmatprep.subr.mxu0 0.0
      %v1747 = vand.u32 %v433, 4294901760
      %v1748 = vsub.f32 %v433, %v1747
      %v1749 = vand.u32 %v1748, 4294901760
      %1750 = vmatpush2.msra.mxu0 %v1749
      %1751 = vmatprep.subr.mxu0 0.0
      %v1752 = vand.u32 %v432, 4294901760
      %v1753 = vsub.f32 %v432, %v1752
      %v1754 = vand.u32 %v1753, 4294901760
      %1755 = vmatpush2.msra.mxu0 %v1754
      %1756 = vmatprep.subr.mxu0 0.0
      %v1757 = vand.u32 %v431, 4294901760
      %v1758 = vsub.f32 %v431, %v1757
      %v1759 = vand.u32 %v1758, 4294901760
      %1760 = vmatpush2.msra.mxu0 %v1759
      %1761 = vmatprep.subr.mxu0 0.0
      %v1762 = vand.u32 %v430, 4294901760
      %v1763 = vsub.f32 %v430, %v1762
      %v1764 = vand.u32 %v1763, 4294901760
      %1765 = vmatpush2.msra.mxu0 %v1764
      %1766 = vmatprep.subr.mxu0 0.0
      %v1767 = vand.u32 %v429, 4294901760
      %v1768 = vsub.f32 %v429, %v1767
      %v1769 = vand.u32 %v1768, 4294901760
      %1770 = vmatpush2.msra.mxu0 %v1769
      %1771 = vmatprep.subr.mxu0 0.0
      %v1772 = vand.u32 %v428, 4294901760
      %v1773 = vsub.f32 %v428, %v1772
      %v1774 = vand.u32 %v1773, 4294901760
      %1775 = vmatpush2.msra.mxu0 %v1774
      %1776 = vmatprep.subr.mxu0 0.0
      %v1777 = vand.u32 %v427, 4294901760
      %v1778 = vsub.f32 %v427, %v1777
      %v1779 = vand.u32 %v1778, 4294901760
      %1780 = vmatpush2.msra.mxu0 %v1779
      %1781 = vmatprep.subr.mxu0 0.0
      %v1782 = vand.u32 %v426, 4294901760
      %v1783 = vsub.f32 %v426, %v1782
      %v1784 = vand.u32 %v1783, 4294901760
      %1785 = vmatpush2.msra.mxu0 %v1784
      %1786 = vmatprep.subr.mxu0 0.0
      %v1787 = vand.u32 %v425, 4294901760
      %v1788 = vsub.f32 %v425, %v1787
      %v1789 = vand.u32 %v1788, 4294901760
      %1790 = vmatpush2.msra.mxu0 %v1789
      %1791 = vmatprep.subr.mxu0 0.0
      %v1792 = vand.u32 %v424, 4294901760
      %v1793 = vsub.f32 %v424, %v1792
      %v1794 = vand.u32 %v1793, 4294901760
      %1795 = vmatpush2.msra.mxu0 %v1794
      %1796 = vmatprep.subr.mxu0 0.0
      %v1797 = vand.u32 %v423, 4294901760
      %v1798 = vsub.f32 %v423, %v1797
      %v1799 = vand.u32 %v1798, 4294901760
      %1800 = vmatpush2.msra.mxu0 %v1799
      %1801 = vmatprep.subr.mxu0 0.0
      %v1802 = vand.u32 %v422, 4294901760
      %v1803 = vsub.f32 %v422, %v1802
      %v1804 = vand.u32 %v1803, 4294901760
      %1805 = vmatpush2.msra.mxu0 %v1804
      %1806 = vmatprep.subr.mxu0 0.0
      %v1807 = vand.u32 %v421, 4294901760
      %v1808 = vsub.f32 %v421, %v1807
      %v1809 = vand.u32 %v1808, 4294901760
      %1810 = vmatpush2.msra.mxu0 %v1809
      %1811 = vmatprep.subr.mxu0 0.0
      %v1812 = vand.u32 %v420, 4294901760
      %v1813 = vsub.f32 %v420, %v1812
      %v1814 = vand.u32 %v1813, 4294901760
      %1815 = vmatpush2.msra.mxu0 %v1814
      %v1816 = vand.u32 %v357, 4294901760
      %1817 = vmatprep.mubr.f32.mxu0 %v1816
      %v1818 = vand.u32 %v320, 4294901760
      %1819 = vmatmul.mubr.f32.gmra.mxu0 %v1818
      %v1820 = vpop.f32.mrf.mxu0
      %v1821 = vadd.f32 %v1488, %v1820
      %v1822 = vpop.f32.mrf.mxu0
      %v1823 = vand.u32 %v359, 4294901760
      %1824 = vmatprep.mubr.f32.mxu0 %v1823
      %v1825 = vand.u32 %v321, 4294901760
      %1826 = vmatmul.mubr.f32.gmra.mxu0 %v1825
      %v1827 = vpop.f32.mrf.mxu0
      %v1828 = vadd.f32 %v1499, %v1827
      %v1829 = vpop.f32.mrf.mxu0
      %v1830 = vand.u32 %v361, 4294901760
      %1831 = vmatprep.mubr.f32.mxu0 %v1830
      %v1832 = vand.u32 %v322, 4294901760
      %1833 = vmatmul.mubr.f32.gmra.mxu0 %v1832
      %v1834 = vpop.f32.mrf.mxu0
      %v1835 = vadd.f32 %v1510, %v1834
      %v1836 = vpop.f32.mrf.mxu0
      %v1837 = vand.u32 %v363, 4294901760
      %1838 = vmatprep.mubr.f32.mxu0 %v1837
      %v1839 = vand.u32 %v323, 4294901760
      %1840 = vmatmul.mubr.f32.gmra.mxu0 %v1839
      %v1841 = vpop.f32.mrf.mxu0
      %v1842 = vadd.f32 %v1521, %v1841
      %v1843 = vpop.f32.mrf.mxu0
      %v1844 = vand.u32 %v365, 4294901760
      %1845 = vmatprep.mubr.f32.mxu0 %v1844
      %v1846 = vand.u32 %v324, 4294901760
      %1847 = vmatmul.mubr.f32.gmra.mxu0 %v1846
      %v1848 = vpop.f32.mrf.mxu0
      %v1849 = vadd.f32 %v1532, %v1848
      %v1850 = vpop.f32.mrf.mxu0
      %v1851 = vand.u32 %v367, 4294901760
      %1852 = vmatprep.mubr.f32.mxu0 %v1851
      %v1853 = vand.u32 %v325, 4294901760
      %1854 = vmatmul.mubr.f32.gmra.mxu0 %v1853
      %v1855 = vpop.f32.mrf.mxu0
      %v1856 = vadd.f32 %v1543, %v1855
      %v1857 = vpop.f32.mrf.mxu0
      %v1858 = vand.u32 %v369, 4294901760
      %1859 = vmatprep.mubr.f32.mxu0 %v1858
      %v1860 = vand.u32 %v326, 4294901760
      %1861 = vmatmul.mubr.f32.gmra.mxu0 %v1860
      %v1862 = vpop.f32.mrf.mxu0
      %v1863 = vadd.f32 %v1554, %v1862
      %v1864 = vpop.f32.mrf.mxu0
      %v1865 = vand.u32 %v371, 4294901760
      %1866 = vmatprep.mubr.f32.mxu0 %v1865
      %v1867 = vand.u32 %v327, 4294901760
      %1868 = vmatmul.mubr.f32.gmra.mxu0 %v1867
      %v1869 = vpop.f32.mrf.mxu0
      %v1870 = vadd.f32 %v1565, %v1869
      %v1871 = vpop.f32.mrf.mxu0
      %v1872 = vand.u32 %v373, 4294901760
      %1873 = vmatprep.mubr.f32.mxu0 %v1872
      %v1874 = vand.u32 %v328, 4294901760
      %1875 = vmatmul.mubr.f32.gmra.mxu0 %v1874
      %v1876 = vpop.f32.mrf.mxu0
      %v1877 = vadd.f32 %v1576, %v1876
      %v1878 = vpop.f32.mrf.mxu0
      %v1879 = vand.u32 %v375, 4294901760
      %1880 = vmatprep.mubr.f32.mxu0 %v1879
      %v1881 = vand.u32 %v329, 4294901760
      %1882 = vmatmul.mubr.f32.gmra.mxu0 %v1881
      %v1883 = vpop.f32.mrf.mxu0
      %v1884 = vadd.f32 %v1587, %v1883
      %v1885 = vpop.f32.mrf.mxu0
      %v1886 = vand.u32 %v377, 4294901760
      %1887 = vmatprep.mubr.f32.mxu0 %v1886
      %v1888 = vand.u32 %v330, 4294901760
      %1889 = vmatmul.mubr.f32.gmra.mxu0 %v1888
      %v1890 = vpop.f32.mrf.mxu0
      %v1891 = vadd.f32 %v1598, %v1890
      %v1892 = vpop.f32.mrf.mxu0
      %v1893 = vand.u32 %v379, 4294901760
      %1894 = vmatprep.mubr.f32.mxu0 %v1893
      %v1895 = vand.u32 %v331, 4294901760
      %1896 = vmatmul.mubr.f32.gmra.mxu0 %v1895
      %v1897 = vpop.f32.mrf.mxu0
      %v1898 = vadd.f32 %v1609, %v1897
      %v1899 = vpop.f32.mrf.mxu0
      %v1900 = vand.u32 %v381, 4294901760
      %1901 = vmatprep.mubr.f32.mxu0 %v1900
      %v1902 = vand.u32 %v332, 4294901760
      %1903 = vmatmul.mubr.f32.gmra.mxu0 %v1902
      %v1904 = vpop.f32.mrf.mxu0
      %v1905 = vadd.f32 %v1620, %v1904
      %v1906 = vpop.f32.mrf.mxu0
      %v1907 = vand.u32 %v383, 4294901760
      %1908 = vmatprep.mubr.f32.mxu0 %v1907
      %v1909 = vand.u32 %v333, 4294901760
      %1910 = vmatmul.mubr.f32.gmra.mxu0 %v1909
      %v1911 = vpop.f32.mrf.mxu0
      %v1912 = vadd.f32 %v1631, %v1911
      %v1913 = vpop.f32.mrf.mxu0
      %v1914 = vand.u32 %v385, 4294901760
      %1915 = vmatprep.mubr.f32.mxu0 %v1914
      %v1916 = vand.u32 %v334, 4294901760
      %1917 = vmatmul.mubr.f32.gmra.mxu0 %v1916
      %v1918 = vpop.f32.mrf.mxu0
      %v1919 = vadd.f32 %v1642, %v1918
      %v1920 = vpop.f32.mrf.mxu0
      %v1921 = vand.u32 %v387, 4294901760
      %1922 = vmatprep.mubr.f32.mxu0 %v1921
      %v1923 = vand.u32 %v335, 4294901760
      %1924 = vmatmul.mubr.f32.gmra.mxu0 %v1923
      %v1925 = vpop.f32.mrf.mxu0
      %v1926 = vadd.f32 %v1653, %v1925
      %v1927 = vpop.f32.mrf.mxu0
      %1928 = vdwg.mxu0
      %1929 = vmatprep.subr.mxu0 0.0
      %v1930 = vand.u32 %v419, 4294901760
      %1931 = vmatpush1.msra.mxu0 %v1930
      %1932 = vmatprep.subr.mxu0 0.0
      %v1933 = vand.u32 %v418, 4294901760
      %1934 = vmatpush1.msra.mxu0 %v1933
      %1935 = vmatprep.subr.mxu0 0.0
      %v1936 = vand.u32 %v417, 4294901760
      %1937 = vmatpush1.msra.mxu0 %v1936
      %1938 = vmatprep.subr.mxu0 0.0
      %v1939 = vand.u32 %v416, 4294901760
      %1940 = vmatpush1.msra.mxu0 %v1939
      %1941 = vmatprep.subr.mxu0 0.0
      %v1942 = vand.u32 %v415, 4294901760
      %1943 = vmatpush1.msra.mxu0 %v1942
      %1944 = vmatprep.subr.mxu0 0.0
      %v1945 = vand.u32 %v414, 4294901760
      %1946 = vmatpush1.msra.mxu0 %v1945
      %1947 = vmatprep.subr.mxu0 0.0
      %v1948 = vand.u32 %v413, 4294901760
      %1949 = vmatpush1.msra.mxu0 %v1948
      %1950 = vmatprep.subr.mxu0 0.0
      %v1951 = vand.u32 %v412, 4294901760
      %1952 = vmatpush1.msra.mxu0 %v1951
      %1953 = vmatprep.subr.mxu0 0.0
      %v1954 = vand.u32 %v411, 4294901760
      %1955 = vmatpush1.msra.mxu0 %v1954
      %1956 = vmatprep.subr.mxu0 0.0
      %v1957 = vand.u32 %v410, 4294901760
      %1958 = vmatpush1.msra.mxu0 %v1957
      %1959 = vmatprep.subr.mxu0 0.0
      %v1960 = vand.u32 %v409, 4294901760
      %1961 = vmatpush1.msra.mxu0 %v1960
      %1962 = vmatprep.subr.mxu0 0.0
      %v1963 = vand.u32 %v408, 4294901760
      %1964 = vmatpush1.msra.mxu0 %v1963
      %1965 = vmatprep.subr.mxu0 0.0
      %v1966 = vand.u32 %v407, 4294901760
      %1967 = vmatpush1.msra.mxu0 %v1966
      %1968 = vmatprep.subr.mxu0 0.0
      %v1969 = vand.u32 %v406, 4294901760
      %1970 = vmatpush1.msra.mxu0 %v1969
      %1971 = vmatprep.subr.mxu0 0.0
      %v1972 = vand.u32 %v405, 4294901760
      %1973 = vmatpush1.msra.mxu0 %v1972
      %1974 = vmatprep.subr.mxu0 0.0
      %v1975 = vand.u32 %v404, 4294901760
      %1976 = vmatpush1.msra.mxu0 %v1975
      %1977 = vmatprep.subr.mxu0 0.0
      %v1978 = vand.u32 %v435, 4294901760
      %1979 = vmatpush2.msra.mxu0 %v1978
      %1980 = vmatprep.subr.mxu0 0.0
      %v1981 = vand.u32 %v434, 4294901760
      %1982 = vmatpush2.msra.mxu0 %v1981
      %1983 = vmatprep.subr.mxu0 0.0
      %v1984 = vand.u32 %v433, 4294901760
      %1985 = vmatpush2.msra.mxu0 %v1984
      %1986 = vmatprep.subr.mxu0 0.0
      %v1987 = vand.u32 %v432, 4294901760
      %1988 = vmatpush2.msra.mxu0 %v1987
      %1989 = vmatprep.subr.mxu0 0.0
      %v1990 = vand.u32 %v431, 4294901760
      %1991 = vmatpush2.msra.mxu0 %v1990
      %1992 = vmatprep.subr.mxu0 0.0
      %v1993 = vand.u32 %v430, 4294901760
      %1994 = vmatpush2.msra.mxu0 %v1993
      %1995 = vmatprep.subr.mxu0 0.0
      %v1996 = vand.u32 %v429, 4294901760
      %1997 = vmatpush2.msra.mxu0 %v1996
      %1998 = vmatprep.subr.mxu0 0.0
      %v1999 = vand.u32 %v428, 4294901760
      %2000 = vmatpush2.msra.mxu0 %v1999
      %2001 = vmatprep.subr.mxu0 0.0
      %v2002 = vand.u32 %v427, 4294901760
      %2003 = vmatpush2.msra.mxu0 %v2002
      %2004 = vmatprep.subr.mxu0 0.0
      %v2005 = vand.u32 %v426, 4294901760
      %2006 = vmatpush2.msra.mxu0 %v2005
      %2007 = vmatprep.subr.mxu0 0.0
      %v2008 = vand.u32 %v425, 4294901760
      %2009 = vmatpush2.msra.mxu0 %v2008
      %2010 = vmatprep.subr.mxu0 0.0
      %v2011 = vand.u32 %v424, 4294901760
      %2012 = vmatpush2.msra.mxu0 %v2011
      %2013 = vmatprep.subr.mxu0 0.0
      %v2014 = vand.u32 %v423, 4294901760
      %2015 = vmatpush2.msra.mxu0 %v2014
      %2016 = vmatprep.subr.mxu0 0.0
      %v2017 = vand.u32 %v422, 4294901760
      %2018 = vmatpush2.msra.mxu0 %v2017
      %2019 = vmatprep.subr.mxu0 0.0
      %v2020 = vand.u32 %v421, 4294901760
      %2021 = vmatpush2.msra.mxu0 %v2020
      %2022 = vmatprep.subr.mxu0 0.0
      %v2023 = vand.u32 %v420, 4294901760
      %2024 = vmatpush2.msra.mxu0 %v2023
      %v2025 = vand.u32 %v357, 4294901760
      %2026 = vmatprep.mubr.f32.mxu0 %v2025
      %v2027 = vand.u32 %v320, 4294901760
      %2028 = vmatmul.mubr.f32.gmra.mxu0 %v2027
      %v2029 = vpop.f32.mrf.mxu0
      %v2030 = vadd.f32 %v1821, %v2029
      %v2031 = vpop.f32.mrf.mxu0
      %v2032 = vand.u32 %v359, 4294901760
      %2033 = vmatprep.mubr.f32.mxu0 %v2032
      %v2034 = vand.u32 %v321, 4294901760
      %2035 = vmatmul.mubr.f32.gmra.mxu0 %v2034
      %v2036 = vpop.f32.mrf.mxu0
      %v2037 = vadd.f32 %v1828, %v2036
      %v2038 = vpop.f32.mrf.mxu0
      %v2039 = vand.u32 %v361, 4294901760
      %2040 = vmatprep.mubr.f32.mxu0 %v2039
      %v2041 = vand.u32 %v322, 4294901760
      %2042 = vmatmul.mubr.f32.gmra.mxu0 %v2041
      %v2043 = vpop.f32.mrf.mxu0
      %v2044 = vadd.f32 %v1835, %v2043
      %v2045 = vpop.f32.mrf.mxu0
      %v2046 = vand.u32 %v363, 4294901760
      %2047 = vmatprep.mubr.f32.mxu0 %v2046
      %v2048 = vand.u32 %v323, 4294901760
      %2049 = vmatmul.mubr.f32.gmra.mxu0 %v2048
      %v2050 = vpop.f32.mrf.mxu0
      %v2051 = vadd.f32 %v1842, %v2050
      %v2052 = vpop.f32.mrf.mxu0
      %v2053 = vand.u32 %v365, 4294901760
      %2054 = vmatprep.mubr.f32.mxu0 %v2053
      %v2055 = vand.u32 %v324, 4294901760
      %2056 = vmatmul.mubr.f32.gmra.mxu0 %v2055
      %v2057 = vpop.f32.mrf.mxu0
      %v2058 = vadd.f32 %v1849, %v2057
      %v2059 = vpop.f32.mrf.mxu0
      %v2060 = vand.u32 %v367, 4294901760
      %2061 = vmatprep.mubr.f32.mxu0 %v2060
      %v2062 = vand.u32 %v325, 4294901760
      %2063 = vmatmul.mubr.f32.gmra.mxu0 %v2062
      %v2064 = vpop.f32.mrf.mxu0
      %v2065 = vadd.f32 %v1856, %v2064
      %v2066 = vpop.f32.mrf.mxu0
      %v2067 = vand.u32 %v369, 4294901760
      %2068 = vmatprep.mubr.f32.mxu0 %v2067
      %v2069 = vand.u32 %v326, 4294901760
      %2070 = vmatmul.mubr.f32.gmra.mxu0 %v2069
      %v2071 = vpop.f32.mrf.mxu0
      %v2072 = vadd.f32 %v1863, %v2071
      %v2073 = vpop.f32.mrf.mxu0
      %v2074 = vand.u32 %v371, 4294901760
      %2075 = vmatprep.mubr.f32.mxu0 %v2074
      %v2076 = vand.u32 %v327, 4294901760
      %2077 = vmatmul.mubr.f32.gmra.mxu0 %v2076
      %v2078 = vpop.f32.mrf.mxu0
      %v2079 = vadd.f32 %v1870, %v2078
      %v2080 = vpop.f32.mrf.mxu0
      %v2081 = vand.u32 %v373, 4294901760
      %2082 = vmatprep.mubr.f32.mxu0 %v2081
      %v2083 = vand.u32 %v328, 4294901760
      %2084 = vmatmul.mubr.f32.gmra.mxu0 %v2083
      %v2085 = vpop.f32.mrf.mxu0
      %v2086 = vadd.f32 %v1877, %v2085
      %v2087 = vpop.f32.mrf.mxu0
      %v2088 = vand.u32 %v375, 4294901760
      %2089 = vmatprep.mubr.f32.mxu0 %v2088
      %v2090 = vand.u32 %v329, 4294901760
      %2091 = vmatmul.mubr.f32.gmra.mxu0 %v2090
      %v2092 = vpop.f32.mrf.mxu0
      %v2093 = vadd.f32 %v1884, %v2092
      %v2094 = vpop.f32.mrf.mxu0
      %v2095 = vand.u32 %v377, 4294901760
      %2096 = vmatprep.mubr.f32.mxu0 %v2095
      %v2097 = vand.u32 %v330, 4294901760
      %2098 = vmatmul.mubr.f32.gmra.mxu0 %v2097
      %v2099 = vpop.f32.mrf.mxu0
      %v2100 = vadd.f32 %v1891, %v2099
      %v2101 = vpop.f32.mrf.mxu0
      %v2102 = vand.u32 %v379, 4294901760
      %2103 = vmatprep.mubr.f32.mxu0 %v2102
      %v2104 = vand.u32 %v331, 4294901760
      %2105 = vmatmul.mubr.f32.gmra.mxu0 %v2104
      %v2106 = vpop.f32.mrf.mxu0
      %v2107 = vadd.f32 %v1898, %v2106
      %v2108 = vpop.f32.mrf.mxu0
      %v2109 = vand.u32 %v381, 4294901760
      %2110 = vmatprep.mubr.f32.mxu0 %v2109
      %v2111 = vand.u32 %v332, 4294901760
      %2112 = vmatmul.mubr.f32.gmra.mxu0 %v2111
      %v2113 = vpop.f32.mrf.mxu0
      %v2114 = vadd.f32 %v1905, %v2113
      %v2115 = vpop.f32.mrf.mxu0
      %v2116 = vand.u32 %v383, 4294901760
      %2117 = vmatprep.mubr.f32.mxu0 %v2116
      %v2118 = vand.u32 %v333, 4294901760
      %2119 = vmatmul.mubr.f32.gmra.mxu0 %v2118
      %v2120 = vpop.f32.mrf.mxu0
      %v2121 = vadd.f32 %v1912, %v2120
      %v2122 = vpop.f32.mrf.mxu0
      %v2123 = vand.u32 %v385, 4294901760
      %2124 = vmatprep.mubr.f32.mxu0 %v2123
      %v2125 = vand.u32 %v334, 4294901760
      %2126 = vmatmul.mubr.f32.gmra.mxu0 %v2125
      %v2127 = vpop.f32.mrf.mxu0
      %v2128 = vadd.f32 %v1919, %v2127
      %v2129 = vpop.f32.mrf.mxu0
      %v2130 = vand.u32 %v387, 4294901760
      %2131 = vmatprep.mubr.f32.mxu0 %v2130
      %v2132 = vand.u32 %v335, 4294901760
      %2133 = vmatmul.mubr.f32.gmra.mxu0 %v2132
      %v2134 = vpop.f32.mrf.mxu0
      %v2135 = vadd.f32 %v1926, %v2134
      %v2136 = vpop.f32.mrf.mxu0
      %2137 = vdwg.mxu0
      %2138 = vxpose.xlu0.b32.start [1/16] %v2030, 128
      %2139 = vxpose.xlu0.b32.cont [2/16] %v2037, 128
      %2140 = vxpose.xlu0.b32.cont [3/16] %v2044, 128
      %2141 = vxpose.xlu0.b32.cont [4/16] %v2051, 128
      %2142 = vxpose.xlu0.b32.cont [5/16] %v2058, 128
      %2143 = vxpose.xlu0.b32.cont [6/16] %v2065, 128
      %2144 = vxpose.xlu0.b32.cont [7/16] %v2072, 128
      %2145 = vxpose.xlu0.b32.cont [8/16] %v2079, 128
      %2146 = vxpose.xlu0.b32.cont [9/16] %v2086, 128
      %2147 = vxpose.xlu0.b32.cont [10/16] %v2093, 128
      %2148 = vxpose.xlu0.b32.cont [11/16] %v2100, 128
      %2149 = vxpose.xlu0.b32.cont [12/16] %v2107, 128
      %2150 = vxpose.xlu0.b32.cont [13/16] %v2114, 128
      %2151 = vxpose.xlu0.b32.cont [14/16] %v2121, 128
      %2152 = vxpose.xlu0.b32.cont [15/16] %v2128, 128
      %2153 = vxpose.xlu0.b32.end [16/16] %v2135, 128
      %v2154 = vpop.trf.xlu0
      %v2155 = vpop.trf.xlu0
      %v2156 = vpop.trf.xlu0
      %v2157 = vpop.trf.xlu0
      %v2158 = vpop.trf.xlu0
      %v2159 = vpop.trf.xlu0
      %v2160 = vpop.trf.xlu0
      %v2161 = vpop.trf.xlu0
      %v2162 = vpop.trf.xlu0
      %v2163 = vpop.trf.xlu0
      %v2164 = vpop.trf.xlu0
      %v2165 = vpop.trf.xlu0
      %v2166 = vpop.trf.xlu0
      %v2167 = vpop.trf.xlu0
      %v2168 = vpop.trf.xlu0
      %v2169 = vpop.trf.xlu0
      %v2170 = vmul.f32 %v2154, %v2154
      %v2171 = vmul.f32 %v2155, %v2155
      %v2172 = vmul.f32 %v2162, %v2162
      %v2173 = vmul.f32 %v2163, %v2163
      %v2174 = vadd.f32 %v2170, %v2172
      %v2175 = vadd.f32 %v2171, %v2173
      %v2176 = vrsqrt.pop %v2174
      %v2177 = vmul.f32 %v2174, %v2176
      %vm2178 = vcmp.eq.f32.partialorder %v2174, inf
      %v2179 = vsel %vm2178, %v2174, %v2177
      %vm2180 = vcmp.eq.f32.partialorder %v2174, 0.0
      %v2181 = vand.u32 %v2174, 2147483648
      %v2182 = vsel %vm2180, %v2181, %v2179
      %v2183 = vrsqrt.pop %v2175
      %v2184 = vmul.f32 %v2175, %v2183
      %vm2185 = vcmp.eq.f32.partialorder %v2175, inf
      %v2186 = vsel %vm2185, %v2175, %v2184
      %vm2187 = vcmp.eq.f32.partialorder %v2175, 0.0
      %v2188 = vand.u32 %v2175, 2147483648
      %v2189 = vsel %vm2187, %v2188, %v2186
      %2190 = vst [vmem:[%s311] sm:$0xff] %v2182
      %2191 = vst [vmem:[%s311 + $0x8] sm:$0xff] %v2189
      %v2192 = vand.u32 2147483647, %v2154
      %v2193 = vand.u32 2147483647, %v2162
      %v2194 = vmin.f32 %v2192, %v2193
      %v2195 = vmax.f32 %v2192, %v2193
      %v2196 = vrcp.pop %v2195
      %v2197 = vmul.f32 %v2194, %v2196
      %v2198 = vmul.f32 %v2197, %v2197
      %v2199 = vmul.f32 0.002785687, %v2198
      %v2200 = vadd.f32 %v2199, -0.015866
      %v2201 = vmul.f32 %v2200, %v2198
      %v2202 = vadd.f32 %v2201, 0.04247222
      %v2203 = vmul.f32 %v2202, %v2198
      %v2204 = vadd.f32 %v2203, -0.074975304
      %v2205 = vmul.f32 %v2204, %v2198
      %v2206 = vadd.f32 %v2205, 0.1064488
      %v2207 = vmul.f32 %v2206, %v2198
      %v2208 = vadd.f32 %v2207, -0.14207031
      %v2209 = vmul.f32 %v2208, %v2198
      %v2210 = vadd.f32 %v2209, 0.19993454
      %v2211 = vmul.f32 %v2210, %v2198
      %v2212 = vadd.f32 %v2211, -0.33333147
      %v2213 = vmul.f32 %v2212, %v2198
      %v2214 = vmul.f32 %v2213, %v2197
      %v2215 = vadd.f32 %v2214, %v2197
      %vm2216 = vcmp.gt.f32.partialorder %v2193, %v2192
      %v2217 = vsub.f32 1.5707964, %v2215
      %v2218 = vsel %vm2216, %v2217, %v2215
      %vm2219 = vcmp.lt.f32.partialorder %v2154, 0.0
      %v2220 = vsub.f32 3.1415927, %v2218
      %v2221 = vsel %vm2219, %v2220, %v2218
      %vm2222 = vcmp.lt.s32.totalorder %v2154, 0
      %v2223 = vsel %vm2222, 3.1415927, 0.0
      %vm2224 = vcmp.eq.f32.partialorder %v2162, 0.0
      %v2225 = vsel %vm2224, %v2223, %v2221
      %vm2226 = vcmp.ne.f32.partialorder %v2154, %v2154
      %vm2227 = vcmp.ne.f32.partialorder %v2162, %v2162
      %vm2228 = vmor %vm2226, %vm2227
      %v2229 = vsel %vm2228, nan, %v2225
      %vm2230 = vcmp.lt.f32.partialorder %v2154, 0.0
      %v2231 = vsel %vm2230, 2.3561945, 0.7853982
      %vm2232 = vcmp.eq.s32.totalorder %v2192, inf
      %vm2233 = vcmp.eq.s32.totalorder %v2193, inf
      %vm2234 = vmand %vm2232, %vm2233
      %v2235 = vsel %vm2234, %v2231, %v2229
      %v2236 = vand.u32 2147483647, %v2235
      %v2237 = vand.u32 %v2162, 2147483648
      %v2238 = vor.u32 %v2236, %v2237
      %v2239 = vand.u32 2147483647, %v2155
      %v2240 = vand.u32 2147483647, %v2163
      %v2241 = vmin.f32 %v2239, %v2240
      %v2242 = vmax.f32 %v2239, %v2240
      %v2243 = vrcp.pop %v2242
      %v2244 = vmul.f32 %v2241, %v2243
      %v2245 = vmul.f32 %v2244, %v2244
      %v2246 = vmul.f32 0.002785687, %v2245
      %v2247 = vadd.f32 %v2246, -0.015866
      %v2248 = vmul.f32 %v2247, %v2245
      %v2249 = vadd.f32 %v2248, 0.04247222
      %v2250 = vmul.f32 %v2249, %v2245
      %v2251 = vadd.f32 %v2250, -0.074975304
      %v2252 = vmul.f32 %v2251, %v2245
      %v2253 = vadd.f32 %v2252, 0.1064488
      %v2254 = vmul.f32 %v2253, %v2245
      %v2255 = vadd.f32 %v2254, -0.14207031
      %v2256 = vmul.f32 %v2255, %v2245
      %v2257 = vadd.f32 %v2256, 0.19993454
      %v2258 = vmul.f32 %v2257, %v2245
      %v2259 = vadd.f32 %v2258, -0.33333147
      %v2260 = vmul.f32 %v2259, %v2245
      %v2261 = vmul.f32 %v2260, %v2244
      %v2262 = vadd.f32 %v2261, %v2244
      %vm2263 = vcmp.gt.f32.partialorder %v2240, %v2239
      %v2264 = vsub.f32 1.5707964, %v2262
      %v2265 = vsel %vm2263, %v2264, %v2262
      %vm2266 = vcmp.lt.f32.partialorder %v2155, 0.0
      %v2267 = vsub.f32 3.1415927, %v2265
      %v2268 = vsel %vm2266, %v2267, %v2265
      %vm2269 = vcmp.lt.s32.totalorder %v2155, 0
      %v2270 = vsel %vm2269, 3.1415927, 0.0
      %vm2271 = vcmp.eq.f32.partialorder %v2163, 0.0
      %v2272 = vsel %vm2271, %v2270, %v2268
      %vm2273 = vcmp.ne.f32.partialorder %v2155, %v2155
      %vm2274 = vcmp.ne.f32.partialorder %v2163, %v2163
      %vm2275 = vmor %vm2273, %vm2274
      %v2276 = vsel %vm2275, nan, %v2272
      %vm2277 = vcmp.lt.f32.partialorder %v2155, 0.0
      %v2278 = vsel %vm2277, 2.3561945, 0.7853982
      %vm2279 = vcmp.eq.s32.totalorder %v2239, inf
      %vm2280 = vcmp.eq.s32.totalorder %v2240, inf
      %vm2281 = vmand %vm2279, %vm2280
      %v2282 = vsel %vm2281, %v2278, %v2276
      %v2283 = vand.u32 2147483647, %v2282
      %v2284 = vand.u32 %v2163, 2147483648
      %v2285 = vor.u32 %v2283, %v2284
      %2286 = vst [vmem:[%s319] sm:$0xff] %v2238
      %2287 = vst [vmem:[%s319 + $0x8] sm:$0xff] %v2285
      %p2288 = scmp.lt.s32.totalorder %s20, 1
      %s2289 = scalar_select %p2288, %s20, 1
      %p2290 = scmp.lt.s32.totalorder %s21, 0
      %s2291 = scalar_select %p2290, %s21, 0
      %s2292 = smul.addr %s2289, 2
      %s2293 = sadd.s32 %s2291, %s2292
      %s2294 = smul.addr %s2293, 8
      %s2295 = scalar_lea.vmem %s3, %s2294
      %p2296 = scmp.lt.s32.totalorder %s20, 1
      %s2297 = scalar_select %p2296, %s20, 1
      %p2298 = scmp.lt.s32.totalorder %s21, 0
      %s2299 = scalar_select %p2298, %s21, 0
      %s2300 = smul.addr %s2297, 2
      %s2301 = sadd.s32 %s2299, %s2300
      %s2302 = smul.addr %s2301, 8
      %s2303 = scalar_lea.vmem %s4, %s2302
      // Predicated region
      $region33: #{conv_stft.1} parent=31 // pred_check
        %p2304 = pneg %p129
      $region34: #{conv_stft.1} parent=31 // pred_check_branch
        %2306 = sbr.rel (%p2304) target = $region36
      $region35: #{conv_stft.1} parent=31 // pred_region
        _
      $region36: #{conv_stft.1} parent=31 // pred_fallthru
        _
      // Predicated region
      $region37: #{conv_stft.1} parent=31 // pred_check
        %p2307 = pneg %p157
      $region38: #{conv_stft.1} parent=31 // pred_check_branch
        %2309 = sbr.rel (%p2307) target = $region40
      $region39: #{conv_stft.1} parent=31 // pred_region
        _
      $region40: #{conv_stft.1} parent=31 // pred_fallthru
        _
    $region32: #{conv_stft.1} parent=5 // pred_fallthru
      _
    %p2310 = scmp.le.s32.totalorder 2, %s11
    // Predicated region
    $region41: #{conv_stft.1} parent=5 // pred_check
      %p2311 = pneg %p2310
    $region42: #{conv_stft.1} parent=5 // pred_check_branch
      %2313 = sbr.rel (%p2311) target = $region44
    $region43: #{conv_stft.1} parent=5 // pred_region
      %s2314 = ssub.s32 %s11, 2
      // Predicated region
      $region45: #{conv_stft.1} parent=43 // pred_check
        %p2315 = pneg %p135
      $region46: #{conv_stft.1} parent=43 // pred_check_branch
        %2317 = sbr.rel (%p2315) target = $region48
      $region47: #{conv_stft.1} parent=43 // pred_region
        %p2318 = scmp.lt.s32.totalorder %s22, 1
        %s2319 = scalar_select %p2318, %s22, 1
        %p2320 = scmp.lt.s32.totalorder %s23, 0
        %s2321 = scalar_select %p2320, %s23, 0
        %s2322 = smul.addr %s2319, 2
        %s2323 = sadd.s32 %s2321, %s2322
        %s2324 = smul.addr %s2323, 8
        %s2325 = scalar_lea.vmem %s3, %s2324
      $region48: #{conv_stft.1} parent=43 // pred_fallthru
        _
      // Predicated region
      $region49: #{conv_stft.1} parent=43 // pred_check
        %p2326 = pneg %p163
      $region50: #{conv_stft.1} parent=43 // pred_check_branch
        %2328 = sbr.rel (%p2326) target = $region52
      $region51: #{conv_stft.1} parent=43 // pred_region
        %p2329 = scmp.lt.s32.totalorder %s22, 1
        %s2330 = scalar_select %p2329, %s22, 1
        %p2331 = scmp.lt.s32.totalorder %s23, 0
        %s2332 = scalar_select %p2331, %s23, 0
        %s2333 = smul.addr %s2330, 2
        %s2334 = sadd.s32 %s2332, %s2333
        %s2335 = smul.addr %s2334, 8
        %s2336 = scalar_lea.vmem %s4, %s2335
      $region52: #{conv_stft.1} parent=43 // pred_fallthru
        _
    $region44: #{conv_stft.1} parent=5 // pred_fallthru
      _
  $region6: #{conv_stft.1} parent=0 // loop_footer
    %s15 = sadd.s32 1, %s11
  $region7: #{conv_stft.1} parent=0 // loop_footer_branch
    %10 = sbr.rel target = $region3
  $region8: #{conv_stft.1} parent=0 // loop_exit
    _

</llo_original>
